<compile_context>
chip_gen: v7x
topology: tpu7x:2x2x1
jax: 0.10.0
libtpu: 0.0.40
codegen_flags: <defaults>
</compile_context>

<pallas_src>
import functools
import numpy as np
import jax
import jax.numpy as jnp
from jax import lax
from jax.experimental import pallas as pl
from jax.experimental.pallas import tpu as pltpu

NP = 128  # lane-aligned padded matrix size (one full MXU tile)


def _round_up(x, m):
    return (x + m - 1) // m * m


# --------------------------------------------------------------------------
# Pallas kernel: sequential grid over chunks of MMF layers.
# --------------------------------------------------------------------------
def _make_mmf_kernel(L, chunk, drop, compute_dtype):
    """Builds the kernel body closed over the static configuration."""

    def kernel(drop_rows_ref,                      # SMEM scalar prefetch (L_pad*drop,) i32
               a_ref, u_ref, mask_ref,             # VMEM inputs
               wav_ref, afin_ref, right_ref, d_ref, arec_ref,   # VMEM outputs
               A_sc, R_sc):                        # f32 VMEM accumulators
        c = pl.program_id(0)
        cdt = compute_dtype

        @pl.when(c == 0)
        def _init():
            A_sc[...] = a_ref[...]
            # right_0 = U_0: skips the U_0 @ I matmul (and the iota identity).
            R_sc[...] = u_ref[0].astype(jnp.float32)

        # Unused wavelet slots (padded layers / rows >= drop) are never read
        # downstream; zero them so the output is deterministic.
        wav_ref[...] = jnp.zeros(wav_ref.shape, wav_ref.dtype)

        def one_layer(j, l_idx):
            U = u_ref[j]                           # (NP, NP) in compute dtype

            def right_update():
                # right_l = U_l @ right_{l-1}
                R_sc[...] = jnp.dot(U, R_sc[...].astype(cdt),
                                    preferred_element_type=jnp.float32)

            if j == 0:
                # chunk 0 / layer 0 was seeded in _init; later chunks update.
                pl.when(l_idx > 0)(right_update)
            else:
                right_update()

            # A_l = U_l @ A_{l-1} @ U_l^T   (f32 accumulate)
            UA = jnp.dot(U, A_sc[...].astype(cdt),
                         preferred_element_type=jnp.float32)
            A_sc[...] = lax.dot_general(UA.astype(cdt), U,
                                        (((1,), (1,)), ((), ())),
                                        preferred_element_type=jnp.float32)

            # Gather this layer's `drop` mother-wavelet rows into the compact
            # lane-dense output (replaces writing the full (NP, NP) A_l).
            for d in range(drop):
                r = drop_rows_ref[l_idx * drop + d]
                wav_ref[j, pl.ds(d, 1), :] = A_sc[pl.ds(r, 1), :]

        # Fully-unrolled chunk loop (== lax.fori_loop(..., unroll=True)):
        # amortizes the per-grid-step overhead over `chunk` layers.
        tail = L % chunk
        for j in range(chunk):
            l_idx = c * chunk + j
            if tail != 0 and j >= tail:
                # possibly an identity-padded tail layer -> guard it out
                pl.when(l_idx < L)(functools.partial(one_layer, j, l_idx))
            else:
                one_layer(j, l_idx)

        # Epilogue only on the last chunk (mask has a constant block index, so
        # it is fetched once, not per step).
        @pl.when(c == pl.num_programs(0) - 1)
        def _finalize():
            A_fin = A_sc[...]
            R_fin = R_sc[...]
            afin_ref[...] = A_fin
            right_ref[...] = R_fin
            D = A_fin * mask_ref[...]
            d_ref[...] = D
            Rc = R_fin.astype(cdt)
            RtD = lax.dot_general(Rc, D.astype(cdt), (((0,), (0,)), ((), ())),
                                  preferred_element_type=jnp.float32)  # right^T @ D
            arec_ref[...] = jnp.dot(RtD.astype(cdt), Rc,
                                    preferred_element_type=jnp.float32)

    return kernel


def mmf_pallas(A_pad, U_stack_pad, mask_pad, drop_rows_flat, *,
               L, drop, chunk, use_bf16=True):
    L_pad = U_stack_pad.shape[0]
    assert L_pad % chunk == 0
    n_chunks = L_pad // chunk
    drop_pad = _round_up(max(drop, 1), 8)
    cdt = jnp.bfloat16 if use_bf16 else jnp.float32
    kernel = _make_mmf_kernel(L, chunk, drop, cdt)

    out_shape = (
        jax.ShapeDtypeStruct((L_pad, drop_pad, NP), jnp.float32),  # wavelet rows
        jax.ShapeDtypeStruct((NP, NP), jnp.float32),               # final A
        jax.ShapeDtypeStruct((NP, NP), jnp.float32),               # right
        jax.ShapeDtypeStruct((NP, NP), jnp.float32),               # D
        jax.ShapeDtypeStruct((NP, NP), jnp.float32),               # A_rec
    )
    grid_spec = pltpu.PrefetchScalarGridSpec(
        num_scalar_prefetch=1,
        grid=(n_chunks,),
        in_specs=[
            pl.BlockSpec((NP, NP), lambda c, dr: (0, 0)),            # A (initial)
            pl.BlockSpec((chunk, NP, NP), lambda c, dr: (c, 0, 0)),  # U chunk
            pl.BlockSpec((NP, NP), lambda c, dr: (0, 0)),            # left mask
        ],
        out_specs=(
            pl.BlockSpec((chunk, drop_pad, NP), lambda c, dr: (c, 0, 0)),
            pl.BlockSpec((NP, NP), lambda c, dr: (0, 0)),
            pl.BlockSpec((NP, NP), lambda c, dr: (0, 0)),
            pl.BlockSpec((NP, NP), lambda c, dr: (0, 0)),
            pl.BlockSpec((NP, NP), lambda c, dr: (0, 0)),
        ),
        scratch_shapes=[pltpu.VMEM((NP, NP), jnp.float32),   # A accumulator
                        pltpu.VMEM((NP, NP), jnp.float32)],  # right accumulator
    )
    return pl.pallas_call(
        kernel,
        out_shape=out_shape,
        grid_spec=grid_spec,
        compiler_params=pltpu.CompilerParams(
            dimension_semantics=("arbitrary",)),
    )(drop_rows_flat, A_pad, U_stack_pad.astype(cdt), mask_pad)


# --------------------------------------------------------------------------
# Deterministic __init__ glue: neighbor selection + eigen init of the K x K
# rotations (mirrors the torch constructor; selection heuristic simplified so
# dropped nodes are always currently active — init glue, forward unchanged).
# --------------------------------------------------------------------------
def build_structure_and_params(A_np, L, K, drop, seed=0):
    N = A_np.shape[0]
    rng = np.random.RandomState(seed)
    neighbors = [[] for _ in range(N)]
    for v1, v2 in np.argwhere(A_np != 0):
        if v1 == v2:
            continue
        neighbors[int(v1)].append(int(v2))
    two_hops = [[] for _ in range(N)]
    for v1 in range(N):
        for v2 in neighbors[v1]:
            for v3 in neighbors[v2]:
                if v3 == v1 or v3 in neighbors[v1] or v3 in two_hops[v1]:
                    continue
                two_hops[v1].append(v3)
    for v1 in range(N):
        neighbors[v1] = neighbors[v1] + two_hops[v1]

    selected_indices, drop_indices, active_indices, all_O = [], [], [], []
    active = np.ones(N, dtype=np.float32)
    A_cur = A_np.astype(np.float64).copy()
    for _l in range(L):
        active_indices.append(active.copy())
        left = np.array([i for i in range(N) if active[i] == 1])
        main = int(left[rng.permutation(left.shape[0])[0]])
        act_nb = [v for v in neighbors[main] if active[v] == 1 and v != main]
        rest_act = [int(v) for v in left if int(v) != main and int(v) not in act_nb]
        inact_nb = [v for v in neighbors[main] if active[v] == 0]
        pool = act_nb + rest_act + inact_nb
        index = np.array([main] + pool[:K - 1], dtype=np.int64)
        assert index.shape[0] == K
        sel = np.zeros(N, dtype=np.float32)
        sel[index] = 1.0
        selected_indices.append(sel)
        dr = np.zeros(N, dtype=np.float32)
        for i in range(drop):
            active[index[i]] = 0.0
            dr[index[i]] = 1.0
        drop_indices.append(dr)
        # deterministic eigen init of O (mirrors torch.eig init)
        ix = np.nonzero(sel)[0]
        A_rows = A_cur[ix]
        A_part = A_rows @ A_rows.T
        _vals, vecs = np.linalg.eigh(A_part)
        O = vecs.T.astype(np.float32)
        all_O.append(O)
        U = np.eye(N, dtype=np.float64)
        U[np.ix_(ix, ix)] = O.astype(np.float64)
        A_cur = U @ A_cur @ U.T
    active_indices.append(active.copy())
    return selected_indices, drop_indices, active_indices, all_O


# --------------------------------------------------------------------------
# Forward (Pallas kernel for the matmul chain; small gathers as glue).
# --------------------------------------------------------------------------
def mmf_forward(A_np, selected_indices, drop_indices, active_indices, all_O,
                L, drop, dim, use_bf16=True, chunk=None):
    N = A_np.shape[0]
    if chunk is None:
        chunk = min(8, L)
    n_chunks = -(-L // chunk)
    L_pad = n_chunks * chunk

    # per-layer rotations, identity-padded to NP and stacked
    U_stack = np.tile(np.eye(NP, dtype=np.float32)[None], (L_pad, 1, 1))
    for l in range(L):
        ix = np.nonzero(selected_indices[l])[0]
        U_stack[l][np.ix_(ix, ix)] = all_O[l]     # == U[outer == 1] = O.flatten()

    A_pad = np.zeros((NP, NP), np.float32)
    A_pad[:N, :N] = A_np

    active_final = active_indices[L]
    outer_act = np.outer(active_final, active_final)
    left_mask = np.eye(N, dtype=np.float32) - np.diag(np.diag(outer_act)) + outer_act
    mask_pad = np.zeros((NP, NP), np.float32)
    mask_pad[:N, :N] = left_mask

    # sorted drop-row indices per layer (matches torch boolean-mask ordering)
    drop_rows = np.zeros((L_pad, drop), np.int32)
    for l in range(L):
        drop_rows[l] = np.nonzero(drop_indices[l])[0]
    drop_rows_flat = drop_rows.reshape(-1)

    wav_p, afin_p, right_p, D_p, Arec_p = mmf_pallas(
        jnp.asarray(A_pad), jnp.asarray(U_stack), jnp.asarray(mask_pad),
        jnp.asarray(drop_rows_flat), L=L, drop=drop, chunk=chunk,
        use_bf16=use_bf16)

    right = right_p[:N, :N]
    D = D_p[:N, :N]
    A_rec = Arec_p[:N, :N]
    A_final = afin_p[:N, :N]

    active_rows = np.nonzero(active_final)[0]
    inactive_rows = np.nonzero(1.0 - active_final)[0]

    # mother wavelets come straight out of the kernel's compact output
    mother_wavelets = wav_p[:L, :drop, :N].reshape(L * drop, N)
    father_wavelets = A_final[jnp.asarray(active_rows)]
    # TODO(synk): coefficient sub-matrix extraction is data-dependent boolean
    # indexing (as in the torch module) and stays as host/XLA glue.
    mother_coefficients = D[jnp.asarray(inactive_rows)][:, jnp.asarray(inactive_rows)]
    father_coefficients = D[jnp.asarray(active_rows)][:, jnp.asarray(active_rows)]
    return (A_rec, right, D, mother_coefficients, father_coefficients,
            mother_wavelets, father_wavelets)


# --------------------------------------------------------------------------
# Pure-numpy (float64) reference of the torch forward, for sanity checking.
# --------------------------------------------------------------------------
def reference_forward(A_np, selected_indices, drop_indices, active_indices,
                      all_O, L, drop, dim):
    N = A_np.shape[0]
    A = A_np.astype(np.float64)
    right = None
    wavelets = []
    for l in range(L):
        ix = np.nonzero(selected_indices[l])[0]
        U = np.eye(N)
        U[np.ix_(ix, ix)] = all_O[l].astype(np.float64)
        right = U if l == 0 else U @ right
        A = U @ A @ U.T
        wavelets.append(A[np.nonzero(drop_indices[l])[0]])
    active_final = active_indices[L]
    outer_act = np.outer(active_final, active_final)
    left_mask = np.eye(N) - np.diag(np.diag(outer_act)) + outer_act
    D = A * left_mask
    active_rows = np.nonzero(active_final)[0]
    inactive_rows = np.nonzero(1.0 - active_final)[0]
    A_rec = right.T @ D @ right
    mc = D[np.ix_(inactive_rows, inactive_rows)]
    fc = D[np.ix_(active_rows, active_rows)]
    mw = np.concatenate(wavelets, 0)
    fw = A[active_rows]
    return A_rec, right, D, mc, fc, mw, fw


if __name__ == "__main__":
    N, L, K, drop = 16, 3, 4, 2
    dim = N - L * drop
    assert dim == N - L * drop

    # deterministic symmetric 0/1 adjacency built from PRNGKey(0)
    key = jax.random.PRNGKey(0)
    B = jax.random.uniform(key, (N, N))
    Bs = np.asarray((B + B.T) * 0.5)
    A_np = (Bs > 0.6).astype(np.float32)
    np.fill_diagonal(A_np, 0.0)
    for i in range(N):  # guarantee a connected ring so every node has neighbors
        A_np[i, (i + 1) % N] = 1.0
        A_np[(i + 1) % N, i] = 1.0

    sel, drp, act, all_O = build_structure_and_params(A_np, L, K, drop, seed=0)
    ref = reference_forward(A_np, sel, drp, act, all_O, L, drop, dim)
    names = ["A_rec", "right", "D", "mother_coeff", "father_coeff",
             "mother_wavelets", "father_wavelets"]

    def check(outs, rtol, atol, fro_tol=None):
        for name, got, want in zip(names, outs, ref):
            g = np.asarray(got, dtype=np.float64)
            w = np.asarray(want, dtype=np.float64)
            assert g.shape == w.shape, (name, g.shape, w.shape)
            err = float(np.max(np.abs(g - w)))
            assert np.allclose(g, w, rtol=rtol, atol=atol), (name, err)
            if fro_tol is not None:
                rel = np.linalg.norm(g - w) / max(np.linalg.norm(w), 1.0)
                assert rel < fro_tol, (name, float(rel))

    # f32 operand path: same numerics as the torch forward (tight check)
    outs_f32 = jax.block_until_ready(
        mmf_forward(A_np, sel, drp, act, all_O, L, drop, dim, use_bf16=False))
    check(outs_f32, rtol=5e-2, atol=5e-2)

    # bf16-operand / f32-accumulate path (native MXU rate on v5e/v6e/v7x)
    outs = jax.block_until_ready(
        mmf_forward(A_np, sel, drp, act, all_O, L, drop, dim, use_bf16=True))
    check(outs, rtol=2.5e-1, atol=2.5e-1, fro_tol=1.5e-1)

    A_rec, right, D, mc, fc, mw, fw = outs
    assert A_rec.shape == (N, N) and right.shape == (N, N) and D.shape == (N, N)
    assert mc.shape == (N - dim, N - dim) and fc.shape == (dim, dim)
    assert mw.shape == (L * drop, N) and fw.shape == (dim, N)

    print("KERNEL_OK")
</pallas_src>

<mosaic_0001>
module attributes {stable_mosaic.version = 11 : i64} {
  func.func @kernel(%arg0: i32, %arg1: memref<6xi32, #tpu.memory_space<smem>>, %arg2: memref<128x128xf32, #tpu.memory_space<vmem>>, %arg3: memref<3x128x128xf32, #tpu.memory_space<vmem>>, %arg4: memref<128x128xf32, #tpu.memory_space<vmem>>, %arg5: memref<3x8x128xf32, #tpu.memory_space<vmem>>, %arg6: memref<128x128xf32, #tpu.memory_space<vmem>>, %arg7: memref<128x128xf32, #tpu.memory_space<vmem>>, %arg8: memref<128x128xf32, #tpu.memory_space<vmem>>, %arg9: memref<128x128xf32, #tpu.memory_space<vmem>>, %arg10: memref<128x128xf32, #tpu.memory_space<vmem>>, %arg11: memref<128x128xf32, #tpu.memory_space<vmem>>) attributes {dimension_semantics = [#tpu.dimension_semantics<arbitrary>], iteration_bounds = array<i64: 1>, scalar_prefetch = 1 : i64, scratch_operands = 2 : i64, tpu.core_type = #tpu.core_type<tc>, window_params = [{pipeline_mode = #tpu.pipeline_mode<synchronous>, transform_indices = @transform_0, window_bounds = array<i64: 128, 128>}, {transform_indices = @transform_1, window_bounds = array<i64: 3, 128, 128>}, {pipeline_mode = #tpu.pipeline_mode<synchronous>, transform_indices = @transform_2, window_bounds = array<i64: 128, 128>}, {transform_indices = @transform_3, window_bounds = array<i64: 3, 8, 128>}, {pipeline_mode = #tpu.pipeline_mode<synchronous>, transform_indices = @transform_4, window_bounds = array<i64: 128, 128>}, {pipeline_mode = #tpu.pipeline_mode<synchronous>, transform_indices = @transform_5, window_bounds = array<i64: 128, 128>}, {pipeline_mode = #tpu.pipeline_mode<synchronous>, transform_indices = @transform_6, window_bounds = array<i64: 128, 128>}, {pipeline_mode = #tpu.pipeline_mode<synchronous>, transform_indices = @transform_7, window_bounds = array<i64: 128, 128>}]} {
    %c0_i32 = arith.constant 0 : i32
    %0 = arith.cmpi eq, %arg0, %c0_i32 : i32
    %1 = arith.extui %0 : i1 to i32
    %c0_i32_0 = arith.constant 0 : i32
    %2 = arith.cmpi ne, %1, %c0_i32_0 : i32
    scf.if %2 {
      %c0_81 = arith.constant 0 : index
      %c0_82 = arith.constant 0 : index
      %95 = vector.load %arg2[%c0_81, %c0_82] : memref<128x128xf32, #tpu.memory_space<vmem>>, vector<128x128xf32>
      %c0_83 = arith.constant 0 : index
      %c0_84 = arith.constant 0 : index
      %96 = vector.load %arg10[%c0_83, %c0_84] : memref<128x128xf32, #tpu.memory_space<vmem>>, vector<128x128xf32>
      tpu.vector_store %arg10[%c0_83, %c0_84], %95 {strides = array<i32>} : memref<128x128xf32, #tpu.memory_space<vmem>>, vector<128x128xf32>,
      %c0_85 = arith.constant 0 : index
      %c0_86 = arith.constant 0 : index
      %c0_87 = arith.constant 0 : index
      %97 = vector.load %arg3[%c0_85, %c0_86, %c0_87] : memref<3x128x128xf32, #tpu.memory_space<vmem>>, vector<1x128x128xf32>
      %98 = vector.shape_cast %97 : vector<1x128x128xf32> to vector<128x128xf32>
      %c0_88 = arith.constant 0 : index
      %c0_89 = arith.constant 0 : index
      %99 = vector.load %arg11[%c0_88, %c0_89] : memref<128x128xf32, #tpu.memory_space<vmem>>, vector<128x128xf32>
      tpu.vector_store %arg11[%c0_88, %c0_89], %98 {strides = array<i32>} : memref<128x128xf32, #tpu.memory_space<vmem>>, vector<128x128xf32>,
    } else {
    }
    %cst = arith.constant 0.000000e+00 : f32
    %3 = vector.broadcast %cst : f32 to vector<3x8x128xf32>
    %c0 = arith.constant 0 : index
    %c0_1 = arith.constant 0 : index
    %c0_2 = arith.constant 0 : index
    %4 = vector.load %arg5[%c0, %c0_1, %c0_2] : memref<3x8x128xf32, #tpu.memory_space<vmem>>, vector<3x8x128xf32>
    tpu.vector_store %arg5[%c0, %c0_1, %c0_2], %3 {strides = array<i32>} : memref<3x8x128xf32, #tpu.memory_space<vmem>>, vector<3x8x128xf32>,
    %c3_i32 = arith.constant 3 : i32
    %5 = arith.muli %arg0, %c3_i32 : i32
    %c0_i32_3 = arith.constant 0 : i32
    %6 = arith.addi %5, %c0_i32_3 : i32
    %c0_4 = arith.constant 0 : index
    %c0_5 = arith.constant 0 : index
    %c0_6 = arith.constant 0 : index
    %7 = vector.load %arg3[%c0_4, %c0_5, %c0_6] : memref<3x128x128xf32, #tpu.memory_space<vmem>>, vector<1x128x128xf32>
    %8 = vector.shape_cast %7 : vector<1x128x128xf32> to vector<128x128xf32>
    %c0_i32_7 = arith.constant 0 : i32
    %9 = arith.cmpi sgt, %6, %c0_i32_7 : i32
    %10 = arith.extui %9 : i1 to i32
    %c0_i32_8 = arith.constant 0 : i32
    %11 = arith.cmpi ne, %10, %c0_i32_8 : i32
    scf.if %11 {
      %c0_81 = arith.constant 0 : index
      %c0_82 = arith.constant 0 : index
      %95 = vector.load %arg11[%c0_81, %c0_82] : memref<128x128xf32, #tpu.memory_space<vmem>>, vector<128x128xf32>
      %cst_83 = arith.constant dense<0.000000e+00> : vector<128x128xf32>
      %96 = tpu.matmul %8, %95, %cst_83 {dimension_numbers = #tpu.dot_dimension_numbers<[1], [0], [0], [1], [0, 0, 1, 1], [], []>} : vector<128x128xf32>, vector<128x128xf32>, vector<128x128xf32> -> vector<128x128xf32>
      %c0_84 = arith.constant 0 : index
      %c0_85 = arith.constant 0 : index
      %97 = vector.load %arg11[%c0_84, %c0_85] : memref<128x128xf32, #tpu.memory_space<vmem>>, vector<128x128xf32>
      tpu.vector_store %arg11[%c0_84, %c0_85], %96 {strides = array<i32>} : memref<128x128xf32, #tpu.memory_space<vmem>>, vector<128x128xf32>,
    } else {
    }
    %c0_9 = arith.constant 0 : index
    %c0_10 = arith.constant 0 : index
    %12 = vector.load %arg10[%c0_9, %c0_10] : memref<128x128xf32, #tpu.memory_space<vmem>>, vector<128x128xf32>
    %cst_11 = arith.constant dense<0.000000e+00> : vector<128x128xf32>
    %13 = tpu.matmul %8, %12, %cst_11 {dimension_numbers = #tpu.dot_dimension_numbers<[1], [0], [0], [1], [0, 0, 1, 1], [], []>} : vector<128x128xf32>, vector<128x128xf32>, vector<128x128xf32> -> vector<128x128xf32>
    %cst_12 = arith.constant dense<0.000000e+00> : vector<128x128xf32>
    %14 = tpu.matmul %13, %8, %cst_12 {dimension_numbers = #tpu.dot_dimension_numbers<[1], [1], [0], [0], [0, 0, 1, 0], [], []>} : vector<128x128xf32>, vector<128x128xf32>, vector<128x128xf32> -> vector<128x128xf32>
    %c0_13 = arith.constant 0 : index
    %c0_14 = arith.constant 0 : index
    %15 = vector.load %arg10[%c0_13, %c0_14] : memref<128x128xf32, #tpu.memory_space<vmem>>, vector<128x128xf32>
    tpu.vector_store %arg10[%c0_13, %c0_14], %14 {strides = array<i32>} : memref<128x128xf32, #tpu.memory_space<vmem>>, vector<128x128xf32>,
    %c2_i32 = arith.constant 2 : i32
    %16 = arith.muli %6, %c2_i32 : i32
    %c0_i32_15 = arith.constant 0 : i32
    %17 = arith.addi %16, %c0_i32_15 : i32
    %18 = arith.index_cast %17 : i32 to index
    %19 = memref.load %arg1[%18] : memref<6xi32, #tpu.memory_space<smem>>
    %20 = arith.index_cast %19 : i32 to index
    %c0_16 = arith.constant 0 : index
    %21 = vector.load %arg10[%20, %c0_16] : memref<128x128xf32, #tpu.memory_space<vmem>>, vector<1x128xf32>
    %c0_17 = arith.constant 0 : index
    %c0_18 = arith.constant 0 : index
    %c0_19 = arith.constant 0 : index
    %22 = vector.load %arg5[%c0_17, %c0_18, %c0_19] : memref<3x8x128xf32, #tpu.memory_space<vmem>>, vector<1x1x128xf32>
    %23 = vector.shape_cast %22 : vector<1x1x128xf32> to vector<1x128xf32>
    %24 = vector.shape_cast %21 : vector<1x128xf32> to vector<1x1x128xf32>
    tpu.vector_store %arg5[%c0_17, %c0_18, %c0_19], %24 {strides = array<i32>} : memref<3x8x128xf32, #tpu.memory_space<vmem>>, vector<1x1x128xf32>,
    %c2_i32_20 = arith.constant 2 : i32
    %25 = arith.muli %6, %c2_i32_20 : i32
    %c1_i32 = arith.constant 1 : i32
    %26 = arith.addi %25, %c1_i32 : i32
    %27 = arith.index_cast %26 : i32 to index
    %28 = memref.load %arg1[%27] : memref<6xi32, #tpu.memory_space<smem>>
    %29 = arith.index_cast %28 : i32 to index
    %c0_21 = arith.constant 0 : index
    %30 = vector.load %arg10[%29, %c0_21] : memref<128x128xf32, #tpu.memory_space<vmem>>, vector<1x128xf32>
    %c0_22 = arith.constant 0 : index
    %c1 = arith.constant 1 : index
    %c0_23 = arith.constant 0 : index
    %31 = vector.load %arg5[%c0_22, %c1, %c0_23] : memref<3x8x128xf32, #tpu.memory_space<vmem>>, vector<1x1x128xf32>
    %32 = vector.shape_cast %31 : vector<1x1x128xf32> to vector<1x128xf32>
    %33 = vector.shape_cast %30 : vector<1x128xf32> to vector<1x1x128xf32>
    tpu.vector_store %arg5[%c0_22, %c1, %c0_23], %33 {strides = array<i32>} : memref<3x8x128xf32, #tpu.memory_space<vmem>>, vector<1x1x128xf32>,
    %c3_i32_24 = arith.constant 3 : i32
    %34 = arith.muli %arg0, %c3_i32_24 : i32
    %c1_i32_25 = arith.constant 1 : i32
    %35 = arith.addi %34, %c1_i32_25 : i32
    %c1_26 = arith.constant 1 : index
    %c0_27 = arith.constant 0 : index
    %c0_28 = arith.constant 0 : index
    %36 = vector.load %arg3[%c1_26, %c0_27, %c0_28] : memref<3x128x128xf32, #tpu.memory_space<vmem>>, vector<1x128x128xf32>
    %37 = vector.shape_cast %36 : vector<1x128x128xf32> to vector<128x128xf32>
    %c0_29 = arith.constant 0 : index
    %c0_30 = arith.constant 0 : index
    %38 = vector.load %arg11[%c0_29, %c0_30] : memref<128x128xf32, #tpu.memory_space<vmem>>, vector<128x128xf32>
    %cst_31 = arith.constant dense<0.000000e+00> : vector<128x128xf32>
    %39 = tpu.matmul %37, %38, %cst_31 {dimension_numbers = #tpu.dot_dimension_numbers<[1], [0], [0], [1], [0, 0, 1, 1], [], []>} : vector<128x128xf32>, vector<128x128xf32>, vector<128x128xf32> -> vector<128x128xf32>
    %c0_32 = arith.constant 0 : index
    %c0_33 = arith.constant 0 : index
    %40 = vector.load %arg11[%c0_32, %c0_33] : memref<128x128xf32, #tpu.memory_space<vmem>>, vector<128x128xf32>
    tpu.vector_store %arg11[%c0_32, %c0_33], %39 {strides = array<i32>} : memref<128x128xf32, #tpu.memory_space<vmem>>, vector<128x128xf32>,
    %c0_34 = arith.constant 0 : index
    %c0_35 = arith.constant 0 : index
    %41 = vector.load %arg10[%c0_34, %c0_35] : memref<128x128xf32, #tpu.memory_space<vmem>>, vector<128x128xf32>
    %cst_36 = arith.constant dense<0.000000e+00> : vector<128x128xf32>
    %42 = tpu.matmul %37, %41, %cst_36 {dimension_numbers = #tpu.dot_dimension_numbers<[1], [0], [0], [1], [0, 0, 1, 1], [], []>} : vector<128x128xf32>, vector<128x128xf32>, vector<128x128xf32> -> vector<128x128xf32>
    %cst_37 = arith.constant dense<0.000000e+00> : vector<128x128xf32>
    %43 = tpu.matmul %42, %37, %cst_37 {dimension_numbers = #tpu.dot_dimension_numbers<[1], [1], [0], [0], [0, 0, 1, 0], [], []>} : vector<128x128xf32>, vector<128x128xf32>, vector<128x128xf32> -> vector<128x128xf32>
    %c0_38 = arith.constant 0 : index
    %c0_39 = arith.constant 0 : index
    %44 = vector.load %arg10[%c0_38, %c0_39] : memref<128x128xf32, #tpu.memory_space<vmem>>, vector<128x128xf32>
    tpu.vector_store %arg10[%c0_38, %c0_39], %43 {strides = array<i32>} : memref<128x128xf32, #tpu.memory_space<vmem>>, vector<128x128xf32>,
    %c2_i32_40 = arith.constant 2 : i32
    %45 = arith.muli %35, %c2_i32_40 : i32
    %c0_i32_41 = arith.constant 0 : i32
    %46 = arith.addi %45, %c0_i32_41 : i32
    %47 = arith.index_cast %46 : i32 to index
    %48 = memref.load %arg1[%47] : memref<6xi32, #tpu.memory_space<smem>>
    %49 = arith.index_cast %48 : i32 to index
    %c0_42 = arith.constant 0 : index
    %50 = vector.load %arg10[%49, %c0_42] : memref<128x128xf32, #tpu.memory_space<vmem>>, vector<1x128xf32>
    %c1_43 = arith.constant 1 : index
    %c0_44 = arith.constant 0 : index
    %c0_45 = arith.constant 0 : index
    %51 = vector.load %arg5[%c1_43, %c0_44, %c0_45] : memref<3x8x128xf32, #tpu.memory_space<vmem>>, vector<1x1x128xf32>
    %52 = vector.shape_cast %51 : vector<1x1x128xf32> to vector<1x128xf32>
    %53 = vector.shape_cast %50 : vector<1x128xf32> to vector<1x1x128xf32>
    tpu.vector_store %arg5[%c1_43, %c0_44, %c0_45], %53 {strides = array<i32>} : memref<3x8x128xf32, #tpu.memory_space<vmem>>, vector<1x1x128xf32>,
    %c2_i32_46 = arith.constant 2 : i32
    %54 = arith.muli %35, %c2_i32_46 : i32
    %c1_i32_47 = arith.constant 1 : i32
    %55 = arith.addi %54, %c1_i32_47 : i32
    %56 = arith.index_cast %55 : i32 to index
    %57 = memref.load %arg1[%56] : memref<6xi32, #tpu.memory_space<smem>>
    %58 = arith.index_cast %57 : i32 to index
    %c0_48 = arith.constant 0 : index
    %59 = vector.load %arg10[%58, %c0_48] : memref<128x128xf32, #tpu.memory_space<vmem>>, vector<1x128xf32>
    %c1_49 = arith.constant 1 : index
    %c1_50 = arith.constant 1 : index
    %c0_51 = arith.constant 0 : index
    %60 = vector.load %arg5[%c1_49, %c1_50, %c0_51] : memref<3x8x128xf32, #tpu.memory_space<vmem>>, vector<1x1x128xf32>
    %61 = vector.shape_cast %60 : vector<1x1x128xf32> to vector<1x128xf32>
    %62 = vector.shape_cast %59 : vector<1x128xf32> to vector<1x1x128xf32>
    tpu.vector_store %arg5[%c1_49, %c1_50, %c0_51], %62 {strides = array<i32>} : memref<3x8x128xf32, #tpu.memory_space<vmem>>, vector<1x1x128xf32>,
    %c3_i32_52 = arith.constant 3 : i32
    %63 = arith.muli %arg0, %c3_i32_52 : i32
    %c2_i32_53 = arith.constant 2 : i32
    %64 = arith.addi %63, %c2_i32_53 : i32
    %c2 = arith.constant 2 : index
    %c0_54 = arith.constant 0 : index
    %c0_55 = arith.constant 0 : index
    %65 = vector.load %arg3[%c2, %c0_54, %c0_55] : memref<3x128x128xf32, #tpu.memory_space<vmem>>, vector<1x128x128xf32>
    %66 = vector.shape_cast %65 : vector<1x128x128xf32> to vector<128x128xf32>
    %c0_56 = arith.constant 0 : index
    %c0_57 = arith.constant 0 : index
    %67 = vector.load %arg11[%c0_56, %c0_57] : memref<128x128xf32, #tpu.memory_space<vmem>>, vector<128x128xf32>
    %cst_58 = arith.constant dense<0.000000e+00> : vector<128x128xf32>
    %68 = tpu.matmul %66, %67, %cst_58 {dimension_numbers = #tpu.dot_dimension_numbers<[1], [0], [0], [1], [0, 0, 1, 1], [], []>} : vector<128x128xf32>, vector<128x128xf32>, vector<128x128xf32> -> vector<128x128xf32>
    %c0_59 = arith.constant 0 : index
    %c0_60 = arith.constant 0 : index
    %69 = vector.load %arg11[%c0_59, %c0_60] : memref<128x128xf32, #tpu.memory_space<vmem>>, vector<128x128xf32>
    tpu.vector_store %arg11[%c0_59, %c0_60], %68 {strides = array<i32>} : memref<128x128xf32, #tpu.memory_space<vmem>>, vector<128x128xf32>,
    %c0_61 = arith.constant 0 : index
    %c0_62 = arith.constant 0 : index
    %70 = vector.load %arg10[%c0_61, %c0_62] : memref<128x128xf32, #tpu.memory_space<vmem>>, vector<128x128xf32>
    %cst_63 = arith.constant dense<0.000000e+00> : vector<128x128xf32>
    %71 = tpu.matmul %66, %70, %cst_63 {dimension_numbers = #tpu.dot_dimension_numbers<[1], [0], [0], [1], [0, 0, 1, 1], [], []>} : vector<128x128xf32>, vector<128x128xf32>, vector<128x128xf32> -> vector<128x128xf32>
    %cst_64 = arith.constant dense<0.000000e+00> : vector<128x128xf32>
    %72 = tpu.matmul %71, %66, %cst_64 {dimension_numbers = #tpu.dot_dimension_numbers<[1], [1], [0], [0], [0, 0, 1, 0], [], []>} : vector<128x128xf32>, vector<128x128xf32>, vector<128x128xf32> -> vector<128x128xf32>
    %c0_65 = arith.constant 0 : index
    %c0_66 = arith.constant 0 : index
    %73 = vector.load %arg10[%c0_65, %c0_66] : memref<128x128xf32, #tpu.memory_space<vmem>>, vector<128x128xf32>
    tpu.vector_store %arg10[%c0_65, %c0_66], %72 {strides = array<i32>} : memref<128x128xf32, #tpu.memory_space<vmem>>, vector<128x128xf32>,
    %c2_i32_67 = arith.constant 2 : i32
    %74 = arith.muli %64, %c2_i32_67 : i32
    %c0_i32_68 = arith.constant 0 : i32
    %75 = arith.addi %74, %c0_i32_68 : i32
    %76 = arith.index_cast %75 : i32 to index
    %77 = memref.load %arg1[%76] : memref<6xi32, #tpu.memory_space<smem>>
    %78 = arith.index_cast %77 : i32 to index
    %c0_69 = arith.constant 0 : index
    %79 = vector.load %arg10[%78, %c0_69] : memref<128x128xf32, #tpu.memory_space<vmem>>, vector<1x128xf32>
    %c2_70 = arith.constant 2 : index
    %c0_71 = arith.constant 0 : index
    %c0_72 = arith.constant 0 : index
    %80 = vector.load %arg5[%c2_70, %c0_71, %c0_72] : memref<3x8x128xf32, #tpu.memory_space<vmem>>, vector<1x1x128xf32>
    %81 = vector.shape_cast %80 : vector<1x1x128xf32> to vector<1x128xf32>
    %82 = vector.shape_cast %79 : vector<1x128xf32> to vector<1x1x128xf32>
    tpu.vector_store %arg5[%c2_70, %c0_71, %c0_72], %82 {strides = array<i32>} : memref<3x8x128xf32, #tpu.memory_space<vmem>>, vector<1x1x128xf32>,
    %c2_i32_73 = arith.constant 2 : i32
    %83 = arith.muli %64, %c2_i32_73 : i32
    %c1_i32_74 = arith.constant 1 : i32
    %84 = arith.addi %83, %c1_i32_74 : i32
    %85 = arith.index_cast %84 : i32 to index
    %86 = memref.load %arg1[%85] : memref<6xi32, #tpu.memory_space<smem>>
    %87 = arith.index_cast %86 : i32 to index
    %c0_75 = arith.constant 0 : index
    %88 = vector.load %arg10[%87, %c0_75] : memref<128x128xf32, #tpu.memory_space<vmem>>, vector<1x128xf32>
    %c2_76 = arith.constant 2 : index
    %c1_77 = arith.constant 1 : index
    %c0_78 = arith.constant 0 : index
    %89 = vector.load %arg5[%c2_76, %c1_77, %c0_78] : memref<3x8x128xf32, #tpu.memory_space<vmem>>, vector<1x1x128xf32>
    %90 = vector.shape_cast %89 : vector<1x1x128xf32> to vector<1x128xf32>
    %91 = vector.shape_cast %88 : vector<1x128xf32> to vector<1x1x128xf32>
    tpu.vector_store %arg5[%c2_76, %c1_77, %c0_78], %91 {strides = array<i32>} : memref<3x8x128xf32, #tpu.memory_space<vmem>>, vector<1x1x128xf32>,
    %c0_i32_79 = arith.constant 0 : i32
    %92 = arith.cmpi eq, %arg0, %c0_i32_79 : i32
    %93 = arith.extui %92 : i1 to i32
    %c0_i32_80 = arith.constant 0 : i32
    %94 = arith.cmpi ne, %93, %c0_i32_80 : i32
    scf.if %94 {
      %c0_81 = arith.constant 0 : index
      %c0_82 = arith.constant 0 : index
      %95 = vector.load %arg10[%c0_81, %c0_82] : memref<128x128xf32, #tpu.memory_space<vmem>>, vector<128x128xf32>
      %c0_83 = arith.constant 0 : index
      %c0_84 = arith.constant 0 : index
      %96 = vector.load %arg11[%c0_83, %c0_84] : memref<128x128xf32, #tpu.memory_space<vmem>>, vector<128x128xf32>
      %c0_85 = arith.constant 0 : index
      %c0_86 = arith.constant 0 : index
      %97 = vector.load %arg6[%c0_85, %c0_86] : memref<128x128xf32, #tpu.memory_space<vmem>>, vector<128x128xf32>
      tpu.vector_store %arg6[%c0_85, %c0_86], %95 {strides = array<i32>} : memref<128x128xf32, #tpu.memory_space<vmem>>, vector<128x128xf32>,
      %c0_87 = arith.constant 0 : index
      %c0_88 = arith.constant 0 : index
      %98 = vector.load %arg7[%c0_87, %c0_88] : memref<128x128xf32, #tpu.memory_space<vmem>>, vector<128x128xf32>
      tpu.vector_store %arg7[%c0_87, %c0_88], %96 {strides = array<i32>} : memref<128x128xf32, #tpu.memory_space<vmem>>, vector<128x128xf32>,
      %c0_89 = arith.constant 0 : index
      %c0_90 = arith.constant 0 : index
      %99 = vector.load %arg4[%c0_89, %c0_90] : memref<128x128xf32, #tpu.memory_space<vmem>>, vector<128x128xf32>
      %100 = arith.mulf %95, %99 : vector<128x128xf32>
      %c0_91 = arith.constant 0 : index
      %c0_92 = arith.constant 0 : index
      %101 = vector.load %arg8[%c0_91, %c0_92] : memref<128x128xf32, #tpu.memory_space<vmem>>, vector<128x128xf32>
      tpu.vector_store %arg8[%c0_91, %c0_92], %100 {strides = array<i32>} : memref<128x128xf32, #tpu.memory_space<vmem>>, vector<128x128xf32>,
      %cst_93 = arith.constant dense<0.000000e+00> : vector<128x128xf32>
      %102 = tpu.matmul %96, %100, %cst_93 {dimension_numbers = #tpu.dot_dimension_numbers<[0], [0], [1], [1], [0, 1, 1, 1], [], []>} : vector<128x128xf32>, vector<128x128xf32>, vector<128x128xf32> -> vector<128x128xf32>
      %cst_94 = arith.constant dense<0.000000e+00> : vector<128x128xf32>
      %103 = tpu.matmul %102, %96, %cst_94 {dimension_numbers = #tpu.dot_dimension_numbers<[1], [0], [0], [1], [0, 0, 1, 1], [], []>} : vector<128x128xf32>, vector<128x128xf32>, vector<128x128xf32> -> vector<128x128xf32>
      %c0_95 = arith.constant 0 : index
      %c0_96 = arith.constant 0 : index
      %104 = vector.load %arg9[%c0_95, %c0_96] : memref<128x128xf32, #tpu.memory_space<vmem>>, vector<128x128xf32>
      tpu.vector_store %arg9[%c0_95, %c0_96], %103 {strides = array<i32>} : memref<128x128xf32, #tpu.memory_space<vmem>>, vector<128x128xf32>,
    } else {
    }
    return
  }
  func.func @transform_0(%arg0: i32, %arg1: memref<6xi32, #tpu.memory_space<smem>>) -> (i32, i32) {
    %c0_i32 = arith.constant 0 : i32
    %c0_i32_0 = arith.constant 0 : i32
    %c0_i32_1 = arith.constant 0 : i32
    return %c0_i32, %c0_i32_0 : i32, i32
  }
  func.func @transform_1(%arg0: i32, %arg1: memref<6xi32, #tpu.memory_space<smem>>) -> (i32, i32, i32) {
    %c0_i32 = arith.constant 0 : i32
    %c0_i32_0 = arith.constant 0 : i32
    %c0_i32_1 = arith.constant 0 : i32
    return %arg0, %c0_i32, %c0_i32_0 : i32, i32, i32
  }
  func.func @transform_2(%arg0: i32, %arg1: memref<6xi32, #tpu.memory_space<smem>>) -> (i32, i32) {
    %c0_i32 = arith.constant 0 : i32
    %c0_i32_0 = arith.constant 0 : i32
    %c0_i32_1 = arith.constant 0 : i32
    return %c0_i32, %c0_i32_0 : i32, i32
  }
  func.func @transform_3(%arg0: i32, %arg1: memref<6xi32, #tpu.memory_space<smem>>) -> (i32, i32, i32) {
    %c0_i32 = arith.constant 0 : i32
    %c0_i32_0 = arith.constant 0 : i32
    %c0_i32_1 = arith.constant 0 : i32
    return %arg0, %c0_i32, %c0_i32_0 : i32, i32, i32
  }
  func.func @transform_4(%arg0: i32, %arg1: memref<6xi32, #tpu.memory_space<smem>>) -> (i32, i32) {
    %c0_i32 = arith.constant 0 : i32
    %c0_i32_0 = arith.constant 0 : i32
    %c0_i32_1 = arith.constant 0 : i32
    return %c0_i32, %c0_i32_0 : i32, i32
  }
  func.func @transform_5(%arg0: i32, %arg1: memref<6xi32, #tpu.memory_space<smem>>) -> (i32, i32) {
    %c0_i32 = arith.constant 0 : i32
    %c0_i32_0 = arith.constant 0 : i32
    %c0_i32_1 = arith.constant 0 : i32
    return %c0_i32, %c0_i32_0 : i32, i32
  }
  func.func @transform_6(%arg0: i32, %arg1: memref<6xi32, #tpu.memory_space<smem>>) -> (i32, i32) {
    %c0_i32 = arith.constant 0 : i32
    %c0_i32_0 = arith.constant 0 : i32
    %c0_i32_1 = arith.constant 0 : i32
    return %c0_i32, %c0_i32_0 : i32, i32
  }
  func.func @transform_7(%arg0: i32, %arg1: memref<6xi32, #tpu.memory_space<smem>>) -> (i32, i32) {
    %c0_i32 = arith.constant 0 : i32
    %c0_i32_0 = arith.constant 0 : i32
    %c0_i32_1 = arith.constant 0 : i32
    return %c0_i32, %c0_i32_0 : i32, i32
  }
}

</mosaic_0001>

<llo_original>
// kernel: tpu_custom_call.1
$region0: #{tpu_custom_call.1}
  #allocation0 [shape = 'u32[]', space=smem, size = 0x4, offset = 0x4, fixed_abs, tag = 'smem constant byte address 0x4 - core index']
  #allocation1 [shape = 'u32[144,128]{1,0:T(1,128)}', space=vmem, size = 0x12000, scoped, tag = 'internal scratch']
  #allocation2 [shape = 'f32[128,128]{1,0:T(8,128)}', space=vmem, size = 0x10000, scoped, tag = 'scratch operand']
  #allocation3 [shape = 'f32[128,128]{1,0:T(8,128)}', space=vmem, size = 0x10000, scoped, tag = 'scratch operand']
  #allocation4 [shape = 's32[1]{0}', space=sflag, size = 0x4, scoped, tag = 'scoped memory for tpu_custom_call.1']
  #allocation5 [shape = 'u8[512]{0}', space=smem, size = 0x200, scoped, tag = 'prefetched SMEM operand 0']
  %s0 = inlined_call_operand.hbm [shape: s32[6], index: 0, kind: input, shape index: {}]
  %s1 = inlined_call_operand.hbm [shape: f32[128,128], index: 1, kind: input, shape index: {}]
  %s2 = inlined_call_operand.hbm [shape: f32[3,128,128], index: 2, kind: input, shape index: {}]
  %s3 = inlined_call_operand.hbm [shape: f32[128,128], index: 3, kind: input, shape index: {}]
  %s4 = inlined_call_operand.hbm [shape: f32[3,8,128], index: 4, kind: output, shape index: {0}]
  %s5 = inlined_call_operand.hbm [shape: f32[128,128], index: 5, kind: output, shape index: {1}]
  %s6 = inlined_call_operand.hbm [shape: f32[128,128], index: 6, kind: output, shape index: {2}]
  %s7 = inlined_call_operand.hbm [shape: f32[128,128], index: 7, kind: output, shape index: {3}]
  %s8 = inlined_call_operand.hbm [shape: f32[128,128], index: 8, kind: output, shape index: {4}]
  %9 = xla_tuple %s4, %s5, %s6, %s7, %s8
  %s10 = sld [smem:[#allocation0]]
  $region78: #{tpu_custom_call.1} parent=0
    _
  %s12 = ssub.s32 1, %s10
  %s13 = scalar_select 0, %s12, %s10
  %15 = dma.hbm_to_smem %s0, 16, [#allocation5], [#allocation4]
  %16 = dma.done [#allocation4], 16
  %17 = sfence
  $region1: #{tpu_custom_call.1} parent=0
    #allocation6 [shape = 'u8[65536]{0}', space=vmem, size = 0x10000, scoped, tag = 'input window, operand 1, single buffered']
    #allocation7 [shape = 's32[1]{0}', space=sflag, size = 0x4, scoped, tag = 'scoped memory for tpu_custom_call.1']
    #allocation8 [shape = 's32[1]{0}', space=sflag, size = 0x4, scoped, tag = 'scoped memory for tpu_custom_call.1']
    #allocation9 [shape = 'u8[196608]{0}', space=vmem, size = 0x30000, scoped, tag = 'input window, operand 2, single buffered']
    #allocation10 [shape = 's32[1]{0}', space=sflag, size = 0x4, scoped, tag = 'scoped memory for tpu_custom_call.1']
    #allocation11 [shape = 'u8[65536]{0}', space=vmem, size = 0x10000, scoped, tag = 'input window, operand 3, single buffered']
    #allocation12 [shape = 'u8[12288]{0}', space=vmem, size = 0x3000, scoped, tag = 'output window, operand 0, single buffered']
    #allocation13 [shape = 'u8[65536]{0}', space=vmem, size = 0x10000, scoped, tag = 'output window, operand 1, single buffered']
    #allocation14 [shape = 's32[1]{0}', space=sflag, size = 0x4, scoped, tag = 'scoped memory for tpu_custom_call.1']
    #allocation15 [shape = 'u8[65536]{0}', space=vmem, size = 0x10000, scoped, tag = 'output window, operand 2, single buffered']
    #allocation16 [shape = 'u8[65536]{0}', space=vmem, size = 0x10000, scoped, tag = 'output window, operand 3, single buffered']
    #allocation17 [shape = 's32[1]{0}', space=sflag, size = 0x4, scoped, tag = 'scoped memory for tpu_custom_call.1']
    #allocation18 [shape = 'u8[65536]{0}', space=vmem, size = 0x10000, scoped, tag = 'output window, operand 4, single buffered']
    %18 = vsyncpa [#allocation7], 0
    %19 = vsyncpa [#allocation10], 0
    %20 = vsyncpa [#allocation8], 0
    %21 = vsyncpa [#allocation14], 0
    %22 = vsyncpa [#allocation17], 0
    // Predicated region
    $region2: #{tpu_custom_call.1} parent=1 // pred_check
      _
    $region3: #{tpu_custom_call.1} parent=1 // pred_check_branch
      %24 = sbr.rel (0) target = $region5
    $region4: #{tpu_custom_call.1} parent=1 // pred_region
      %s26 = ssub.s32 2048, 2048
      %27 = vsyncadd [#allocation7], %s26
      %s28 = sshll.u32 [#allocation6], 4
      %s29 = int_to_ptr.vmem [resolvable:$true] %s28
      %34 = dma.hbm_to_vmem [thread:$0]  %s1, 2048, %s29, [#allocation7], 128, 128, 8
    $region5: #{tpu_custom_call.1} parent=1 // pred_fallthru
      _
    // Predicated region
    $region6: #{tpu_custom_call.1} parent=1 // pred_check
      _
    $region7: #{tpu_custom_call.1} parent=1 // pred_check_branch
      %36 = sbr.rel (0) target = $region9
    $region8: #{tpu_custom_call.1} parent=1 // pred_region
      %s38 = ssub.s32 6144, 6144
      %39 = vsyncadd [#allocation10], %s38
      %s40 = sshll.u32 [#allocation9], 4
      %s41 = int_to_ptr.vmem [resolvable:$true] %s40
      %46 = dma.hbm_to_vmem [thread:$0]  %s2, 6144, %s41, [#allocation10], 128, 128, 8
    $region9: #{tpu_custom_call.1} parent=1 // pred_fallthru
      _
    // Predicated region
    $region10: #{tpu_custom_call.1} parent=1 // pred_check
      _
    $region11: #{tpu_custom_call.1} parent=1 // pred_check_branch
      %48 = sbr.rel (0) target = $region13
    $region12: #{tpu_custom_call.1} parent=1 // pred_region
      %s50 = ssub.s32 2048, 2048
      %51 = vsyncadd [#allocation10], %s50
      %s52 = sshll.u32 [#allocation11], 4
      %s53 = int_to_ptr.vmem [resolvable:$true] %s52
      %58 = dma.hbm_to_vmem [thread:$0]  %s3, 2048, %s53, [#allocation10], 128, 128, 8
    $region13: #{tpu_custom_call.1} parent=1 // pred_fallthru
      _
    // Predicated region
    $region14: #{tpu_custom_call.1} parent=1 // pred_check
      _
    $region15: #{tpu_custom_call.1} parent=1 // pred_check_branch
      %60 = sbr.rel (0) target = $region17
    $region16: #{tpu_custom_call.1} parent=1 // pred_region
      %61 = dma.done [#allocation7], 2048
    $region17: #{tpu_custom_call.1} parent=1 // pred_fallthru
      _
    // Predicated region
    $region18: #{tpu_custom_call.1} parent=1 // pred_check
      _
    $region19: #{tpu_custom_call.1} parent=1 // pred_check_branch
      %63 = sbr.rel (0) target = $region21
    $region20: #{tpu_custom_call.1} parent=1 // pred_region
      %64 = dma.done [#allocation10], 6144
    $region21: #{tpu_custom_call.1} parent=1 // pred_fallthru
      _
    // Predicated region
    $region22: #{tpu_custom_call.1} parent=1 // pred_check
      _
    $region23: #{tpu_custom_call.1} parent=1 // pred_check_branch
      %66 = sbr.rel (0) target = $region25
    $region24: #{tpu_custom_call.1} parent=1 // pred_region
      %67 = dma.done [#allocation10], 2048
    $region25: #{tpu_custom_call.1} parent=1 // pred_fallthru
      _
    %p68 = scmp.eq.s32.totalorder 0, 0
    // Predicated region
    $region26: #{tpu_custom_call.1} parent=1 // pred_check
      %p69 = pneg %p68
    $region27: #{tpu_custom_call.1} parent=1 // pred_check_branch
      %71 = sbr.rel (%p69) target = $region29
    $region28: #{tpu_custom_call.1} parent=1 // pred_region
      %v72 = vld [vmem:[#allocation6] sm:$0xff]
      %v73 = vld [vmem:[#allocation6 + $0x8] sm:$0xff]
      %v74 = vld [vmem:[#allocation6 + $0x10] sm:$0xff]
      %v75 = vld [vmem:[#allocation6 + $0x18] sm:$0xff]
      %v76 = vld [vmem:[#allocation6 + $0x20] sm:$0xff]
      %v77 = vld [vmem:[#allocation6 + $0x28] sm:$0xff]
      %v78 = vld [vmem:[#allocation6 + $0x30] sm:$0xff]
      %v79 = vld [vmem:[#allocation6 + $0x38] sm:$0xff]
      %v80 = vld [vmem:[#allocation6 + $0x40] sm:$0xff]
      %v81 = vld [vmem:[#allocation6 + $0x48] sm:$0xff]
      %v82 = vld [vmem:[#allocation6 + $0x50] sm:$0xff]
      %v83 = vld [vmem:[#allocation6 + $0x58] sm:$0xff]
      %v84 = vld [vmem:[#allocation6 + $0x60] sm:$0xff]
      %v85 = vld [vmem:[#allocation6 + $0x68] sm:$0xff]
      %v86 = vld [vmem:[#allocation6 + $0x70] sm:$0xff]
      %v87 = vld [vmem:[#allocation6 + $0x78] sm:$0xff]
      %88 = vst [vmem:[#allocation2] sm:$0xff] %v72
      %89 = vst [vmem:[#allocation2 + $0x8] sm:$0xff] %v73
      %90 = vst [vmem:[#allocation2 + $0x10] sm:$0xff] %v74
      %91 = vst [vmem:[#allocation2 + $0x18] sm:$0xff] %v75
      %92 = vst [vmem:[#allocation2 + $0x20] sm:$0xff] %v76
      %93 = vst [vmem:[#allocation2 + $0x28] sm:$0xff] %v77
      %94 = vst [vmem:[#allocation2 + $0x30] sm:$0xff] %v78
      %95 = vst [vmem:[#allocation2 + $0x38] sm:$0xff] %v79
      %96 = vst [vmem:[#allocation2 + $0x40] sm:$0xff] %v80
      %97 = vst [vmem:[#allocation2 + $0x48] sm:$0xff] %v81
      %98 = vst [vmem:[#allocation2 + $0x50] sm:$0xff] %v82
      %99 = vst [vmem:[#allocation2 + $0x58] sm:$0xff] %v83
      %100 = vst [vmem:[#allocation2 + $0x60] sm:$0xff] %v84
      %101 = vst [vmem:[#allocation2 + $0x68] sm:$0xff] %v85
      %102 = vst [vmem:[#allocation2 + $0x70] sm:$0xff] %v86
      %103 = vst [vmem:[#allocation2 + $0x78] sm:$0xff] %v87
      %v104 = vld [vmem:[#allocation9] sm:$0xff]
      %v105 = vld [vmem:[#allocation9 + $0x8] sm:$0xff]
      %v106 = vld [vmem:[#allocation9 + $0x10] sm:$0xff]
      %v107 = vld [vmem:[#allocation9 + $0x18] sm:$0xff]
      %v108 = vld [vmem:[#allocation9 + $0x20] sm:$0xff]
      %v109 = vld [vmem:[#allocation9 + $0x28] sm:$0xff]
      %v110 = vld [vmem:[#allocation9 + $0x30] sm:$0xff]
      %v111 = vld [vmem:[#allocation9 + $0x38] sm:$0xff]
      %v112 = vld [vmem:[#allocation9 + $0x40] sm:$0xff]
      %v113 = vld [vmem:[#allocation9 + $0x48] sm:$0xff]
      %v114 = vld [vmem:[#allocation9 + $0x50] sm:$0xff]
      %v115 = vld [vmem:[#allocation9 + $0x58] sm:$0xff]
      %v116 = vld [vmem:[#allocation9 + $0x60] sm:$0xff]
      %v117 = vld [vmem:[#allocation9 + $0x68] sm:$0xff]
      %v118 = vld [vmem:[#allocation9 + $0x70] sm:$0xff]
      %v119 = vld [vmem:[#allocation9 + $0x78] sm:$0xff]
      %120 = vst [vmem:[#allocation3] sm:$0xff] %v104
      %121 = vst [vmem:[#allocation3 + $0x8] sm:$0xff] %v105
      %122 = vst [vmem:[#allocation3 + $0x10] sm:$0xff] %v106
      %123 = vst [vmem:[#allocation3 + $0x18] sm:$0xff] %v107
      %124 = vst [vmem:[#allocation3 + $0x20] sm:$0xff] %v108
      %125 = vst [vmem:[#allocation3 + $0x28] sm:$0xff] %v109
      %126 = vst [vmem:[#allocation3 + $0x30] sm:$0xff] %v110
      %127 = vst [vmem:[#allocation3 + $0x38] sm:$0xff] %v111
      %128 = vst [vmem:[#allocation3 + $0x40] sm:$0xff] %v112
      %129 = vst [vmem:[#allocation3 + $0x48] sm:$0xff] %v113
      %130 = vst [vmem:[#allocation3 + $0x50] sm:$0xff] %v114
      %131 = vst [vmem:[#allocation3 + $0x58] sm:$0xff] %v115
      %132 = vst [vmem:[#allocation3 + $0x60] sm:$0xff] %v116
      %133 = vst [vmem:[#allocation3 + $0x68] sm:$0xff] %v117
      %134 = vst [vmem:[#allocation3 + $0x70] sm:$0xff] %v118
      %135 = vst [vmem:[#allocation3 + $0x78] sm:$0xff] %v119
    $region29: #{tpu_custom_call.1} parent=1 // pred_fallthru
      _
    %136 = vst [vmem:[#allocation12] sm:$0xff] 0.0
    %137 = vst [vmem:[#allocation12 + $0x8] sm:$0xff] 0.0
    %138 = vst [vmem:[#allocation12 + $0x10] sm:$0xff] 0.0
    %s139 = smul.u32 0, 3
    %v140 = vld [vmem:[#allocation9] sm:$0xff]
    %v141 = vld [vmem:[#allocation9 + $0x8] sm:$0xff]
    %v142 = vld [vmem:[#allocation9 + $0x10] sm:$0xff]
    %v143 = vld [vmem:[#allocation9 + $0x18] sm:$0xff]
    %v144 = vld [vmem:[#allocation9 + $0x20] sm:$0xff]
    %v145 = vld [vmem:[#allocation9 + $0x28] sm:$0xff]
    %v146 = vld [vmem:[#allocation9 + $0x30] sm:$0xff]
    %v147 = vld [vmem:[#allocation9 + $0x38] sm:$0xff]
    %v148 = vld [vmem:[#allocation9 + $0x40] sm:$0xff]
    %v149 = vld [vmem:[#allocation9 + $0x48] sm:$0xff]
    %v150 = vld [vmem:[#allocation9 + $0x50] sm:$0xff]
    %v151 = vld [vmem:[#allocation9 + $0x58] sm:$0xff]
    %v152 = vld [vmem:[#allocation9 + $0x60] sm:$0xff]
    %v153 = vld [vmem:[#allocation9 + $0x68] sm:$0xff]
    %v154 = vld [vmem:[#allocation9 + $0x70] sm:$0xff]
    %v155 = vld [vmem:[#allocation9 + $0x78] sm:$0xff]
    %p156 = scmp.gt.s32.totalorder %s139, 0
    // Predicated region
    $region30: #{tpu_custom_call.1} parent=1 // pred_check
      %p157 = pneg %p156
    $region31: #{tpu_custom_call.1} parent=1 // pred_check_branch
      %159 = sbr.rel (%p157) target = $region33
    $region32: #{tpu_custom_call.1} parent=1 // pred_region
      %v160 = vld [vmem:[#allocation3] sm:$0xff]
      %v161 = vld [vmem:[#allocation3 + $0x8] sm:$0xff]
      %v162 = vld [vmem:[#allocation3 + $0x10] sm:$0xff]
      %v163 = vld [vmem:[#allocation3 + $0x18] sm:$0xff]
      %v164 = vld [vmem:[#allocation3 + $0x20] sm:$0xff]
      %v165 = vld [vmem:[#allocation3 + $0x28] sm:$0xff]
      %v166 = vld [vmem:[#allocation3 + $0x30] sm:$0xff]
      %v167 = vld [vmem:[#allocation3 + $0x38] sm:$0xff]
      %v168 = vld [vmem:[#allocation3 + $0x40] sm:$0xff]
      %v169 = vld [vmem:[#allocation3 + $0x48] sm:$0xff]
      %v170 = vld [vmem:[#allocation3 + $0x50] sm:$0xff]
      %v171 = vld [vmem:[#allocation3 + $0x58] sm:$0xff]
      %v172 = vld [vmem:[#allocation3 + $0x60] sm:$0xff]
      %v173 = vld [vmem:[#allocation3 + $0x68] sm:$0xff]
      %v174 = vld [vmem:[#allocation3 + $0x70] sm:$0xff]
      %v175 = vld [vmem:[#allocation3 + $0x78] sm:$0xff]
      %176 = vmatprep.subr.mxu0 0.0
      %177 = vmatpush1.msra.mxu0 %v160
      %178 = vmatprep.subr.mxu0 0.0
      %179 = vmatpush1.msra.mxu0 %v161
      %180 = vmatprep.subr.mxu0 0.0
      %181 = vmatpush1.msra.mxu0 %v162
      %182 = vmatprep.subr.mxu0 0.0
      %183 = vmatpush1.msra.mxu0 %v163
      %184 = vmatprep.subr.mxu0 0.0
      %185 = vmatpush1.msra.mxu0 %v164
      %186 = vmatprep.subr.mxu0 0.0
      %187 = vmatpush1.msra.mxu0 %v165
      %188 = vmatprep.subr.mxu0 0.0
      %189 = vmatpush1.msra.mxu0 %v166
      %190 = vmatprep.subr.mxu0 0.0
      %191 = vmatpush1.msra.mxu0 %v167
      %192 = vmatprep.subr.mxu0 0.0
      %193 = vmatpush1.msra.mxu0 %v168
      %194 = vmatprep.subr.mxu0 0.0
      %195 = vmatpush1.msra.mxu0 %v169
      %196 = vmatprep.subr.mxu0 0.0
      %197 = vmatpush1.msra.mxu0 %v170
      %198 = vmatprep.subr.mxu0 0.0
      %199 = vmatpush1.msra.mxu0 %v171
      %200 = vmatprep.subr.mxu0 0.0
      %201 = vmatpush1.msra.mxu0 %v172
      %202 = vmatprep.subr.mxu0 0.0
      %203 = vmatpush1.msra.mxu0 %v173
      %204 = vmatprep.subr.mxu0 0.0
      %205 = vmatpush1.msra.mxu0 %v174
      %206 = vmatprep.subr.mxu0 0.0
      %207 = vmatpush1.msra.mxu0 %v175
      %208 = vmatprep.subr.mxu0 0.0
      %209 = vmatpush1.msra.mxu0 0.0
      %210 = vmatprep.subr.mxu0 0.0
      %211 = vmatpush1.msra.mxu0 0.0
      %212 = vmatprep.subr.mxu0 0.0
      %213 = vmatpush1.msra.mxu0 0.0
      %214 = vmatprep.subr.mxu0 0.0
      %215 = vmatpush1.msra.mxu0 0.0
      %216 = vmatprep.subr.mxu0 0.0
      %217 = vmatpush1.msra.mxu0 0.0
      %218 = vmatprep.subr.mxu0 0.0
      %219 = vmatpush1.msra.mxu0 0.0
      %220 = vmatprep.subr.mxu0 0.0
      %221 = vmatpush1.msra.mxu0 0.0
      %222 = vmatprep.subr.mxu0 0.0
      %223 = vmatpush1.msra.mxu0 0.0
      %224 = vmatprep.subr.mxu0 0.0
      %225 = vmatpush1.msra.mxu0 0.0
      %226 = vmatprep.subr.mxu0 0.0
      %227 = vmatpush1.msra.mxu0 0.0
      %228 = vmatprep.subr.mxu0 0.0
      %229 = vmatpush1.msra.mxu0 0.0
      %230 = vmatprep.subr.mxu0 0.0
      %231 = vmatpush1.msra.mxu0 0.0
      %232 = vmatprep.subr.mxu0 0.0
      %233 = vmatpush1.msra.mxu0 0.0
      %234 = vmatprep.subr.mxu0 0.0
      %235 = vmatpush1.msra.mxu0 0.0
      %236 = vmatprep.subr.mxu0 0.0
      %237 = vmatpush1.msra.mxu0 0.0
      %238 = vmatprep.subr.mxu0 0.0
      %239 = vmatpush1.msra.mxu0 0.0
      %240 = vmatprep.mubr.f32.mxu0 0.0
      %241 = vmatmul.mubr.f32.gmra.mrb[0].mxu0 %v140
      %v242 = vpop.f32.mrb[0].mxu0
      %v243 = vadd.f32 0.0, %v242
      %v244 = vpop.f32.mrb[0].mxu0
      %245 = vmatprep.mubr.f32.mxu0 0.0
      %246 = vmatmul.mubr.f32.gmra.mrb[0].mxu0 %v141
      %v247 = vpop.f32.mrb[0].mxu0
      %v248 = vadd.f32 0.0, %v247
      %v249 = vpop.f32.mrb[0].mxu0
      %250 = vmatprep.mubr.f32.mxu0 0.0
      %251 = vmatmul.mubr.f32.gmra.mrb[0].mxu0 %v142
      %v252 = vpop.f32.mrb[0].mxu0
      %v253 = vadd.f32 0.0, %v252
      %v254 = vpop.f32.mrb[0].mxu0
      %255 = vmatprep.mubr.f32.mxu0 0.0
      %256 = vmatmul.mubr.f32.gmra.mrb[0].mxu0 %v143
      %v257 = vpop.f32.mrb[0].mxu0
      %v258 = vadd.f32 0.0, %v257
      %v259 = vpop.f32.mrb[0].mxu0
      %260 = vmatprep.mubr.f32.mxu0 0.0
      %261 = vmatmul.mubr.f32.gmra.mrb[0].mxu0 %v144
      %v262 = vpop.f32.mrb[0].mxu0
      %v263 = vadd.f32 0.0, %v262
      %v264 = vpop.f32.mrb[0].mxu0
      %265 = vmatprep.mubr.f32.mxu0 0.0
      %266 = vmatmul.mubr.f32.gmra.mrb[0].mxu0 %v145
      %v267 = vpop.f32.mrb[0].mxu0
      %v268 = vadd.f32 0.0, %v267
      %v269 = vpop.f32.mrb[0].mxu0
      %270 = vmatprep.mubr.f32.mxu0 0.0
      %271 = vmatmul.mubr.f32.gmra.mrb[0].mxu0 %v146
      %v272 = vpop.f32.mrb[0].mxu0
      %v273 = vadd.f32 0.0, %v272
      %v274 = vpop.f32.mrb[0].mxu0
      %275 = vmatprep.mubr.f32.mxu0 0.0
      %276 = vmatmul.mubr.f32.gmra.mrb[0].mxu0 %v147
      %v277 = vpop.f32.mrb[0].mxu0
      %v278 = vadd.f32 0.0, %v277
      %v279 = vpop.f32.mrb[0].mxu0
      %280 = vmatprep.mubr.f32.mxu0 0.0
      %281 = vmatmul.mubr.f32.gmra.mrb[0].mxu0 %v148
      %v282 = vpop.f32.mrb[0].mxu0
      %v283 = vadd.f32 0.0, %v282
      %v284 = vpop.f32.mrb[0].mxu0
      %285 = vmatprep.mubr.f32.mxu0 0.0
      %286 = vmatmul.mubr.f32.gmra.mrb[0].mxu0 %v149
      %v287 = vpop.f32.mrb[0].mxu0
      %v288 = vadd.f32 0.0, %v287
      %v289 = vpop.f32.mrb[0].mxu0
      %290 = vmatprep.mubr.f32.mxu0 0.0
      %291 = vmatmul.mubr.f32.gmra.mrb[0].mxu0 %v150
      %v292 = vpop.f32.mrb[0].mxu0
      %v293 = vadd.f32 0.0, %v292
      %v294 = vpop.f32.mrb[0].mxu0
      %295 = vmatprep.mubr.f32.mxu0 0.0
      %296 = vmatmul.mubr.f32.gmra.mrb[0].mxu0 %v151
      %v297 = vpop.f32.mrb[0].mxu0
      %v298 = vadd.f32 0.0, %v297
      %v299 = vpop.f32.mrb[0].mxu0
      %300 = vmatprep.mubr.f32.mxu0 0.0
      %301 = vmatmul.mubr.f32.gmra.mrb[0].mxu0 %v152
      %v302 = vpop.f32.mrb[0].mxu0
      %v303 = vadd.f32 0.0, %v302
      %v304 = vpop.f32.mrb[0].mxu0
      %305 = vmatprep.mubr.f32.mxu0 0.0
      %306 = vmatmul.mubr.f32.gmra.mrb[0].mxu0 %v153
      %v307 = vpop.f32.mrb[0].mxu0
      %v308 = vadd.f32 0.0, %v307
      %v309 = vpop.f32.mrb[0].mxu0
      %310 = vmatprep.mubr.f32.mxu0 0.0
      %311 = vmatmul.mubr.f32.gmra.mrb[0].mxu0 %v154
      %v312 = vpop.f32.mrb[0].mxu0
      %v313 = vadd.f32 0.0, %v312
      %v314 = vpop.f32.mrb[0].mxu0
      %315 = vmatprep.mubr.f32.mxu0 0.0
      %316 = vmatmul.mubr.f32.gmra.mrb[0].mxu0 %v155
      %v317 = vpop.f32.mrb[0].mxu0
      %v318 = vadd.f32 0.0, %v317
      %v319 = vpop.f32.mrb[0].mxu0
      %320 = vdwg.mxu0
      %321 = vst [vmem:[#allocation3] sm:$0xff] %v243
      %322 = vst [vmem:[#allocation3 + $0x8] sm:$0xff] %v248
      %323 = vst [vmem:[#allocation3 + $0x10] sm:$0xff] %v253
      %324 = vst [vmem:[#allocation3 + $0x18] sm:$0xff] %v258
      %325 = vst [vmem:[#allocation3 + $0x20] sm:$0xff] %v263
      %326 = vst [vmem:[#allocation3 + $0x28] sm:$0xff] %v268
      %327 = vst [vmem:[#allocation3 + $0x30] sm:$0xff] %v273
      %328 = vst [vmem:[#allocation3 + $0x38] sm:$0xff] %v278
      %329 = vst [vmem:[#allocation3 + $0x40] sm:$0xff] %v283
      %330 = vst [vmem:[#allocation3 + $0x48] sm:$0xff] %v288
      %331 = vst [vmem:[#allocation3 + $0x50] sm:$0xff] %v293
      %332 = vst [vmem:[#allocation3 + $0x58] sm:$0xff] %v298
      %333 = vst [vmem:[#allocation3 + $0x60] sm:$0xff] %v303
      %334 = vst [vmem:[#allocation3 + $0x68] sm:$0xff] %v308
      %335 = vst [vmem:[#allocation3 + $0x70] sm:$0xff] %v313
      %336 = vst [vmem:[#allocation3 + $0x78] sm:$0xff] %v318
    $region33: #{tpu_custom_call.1} parent=1 // pred_fallthru
      _
    %v337 = vld [vmem:[#allocation2] sm:$0xff]
    %v338 = vld [vmem:[#allocation2 + $0x8] sm:$0xff]
    %v339 = vld [vmem:[#allocation2 + $0x10] sm:$0xff]
    %v340 = vld [vmem:[#allocation2 + $0x18] sm:$0xff]
    %v341 = vld [vmem:[#allocation2 + $0x20] sm:$0xff]
    %v342 = vld [vmem:[#allocation2 + $0x28] sm:$0xff]
    %v343 = vld [vmem:[#allocation2 + $0x30] sm:$0xff]
    %v344 = vld [vmem:[#allocation2 + $0x38] sm:$0xff]
    %v345 = vld [vmem:[#allocation2 + $0x40] sm:$0xff]
    %v346 = vld [vmem:[#allocation2 + $0x48] sm:$0xff]
    %v347 = vld [vmem:[#allocation2 + $0x50] sm:$0xff]
    %v348 = vld [vmem:[#allocation2 + $0x58] sm:$0xff]
    %v349 = vld [vmem:[#allocation2 + $0x60] sm:$0xff]
    %v350 = vld [vmem:[#allocation2 + $0x68] sm:$0xff]
    %v351 = vld [vmem:[#allocation2 + $0x70] sm:$0xff]
    %v352 = vld [vmem:[#allocation2 + $0x78] sm:$0xff]
    %353 = vmatprep.subr.mxu0 0.0
    %354 = vmatpush1.msra.mxu0 %v337
    %355 = vmatprep.subr.mxu0 0.0
    %356 = vmatpush1.msra.mxu0 %v338
    %357 = vmatprep.subr.mxu0 0.0
    %358 = vmatpush1.msra.mxu0 %v339
    %359 = vmatprep.subr.mxu0 0.0
    %360 = vmatpush1.msra.mxu0 %v340
    %361 = vmatprep.subr.mxu0 0.0
    %362 = vmatpush1.msra.mxu0 %v341
    %363 = vmatprep.subr.mxu0 0.0
    %364 = vmatpush1.msra.mxu0 %v342
    %365 = vmatprep.subr.mxu0 0.0
    %366 = vmatpush1.msra.mxu0 %v343
    %367 = vmatprep.subr.mxu0 0.0
    %368 = vmatpush1.msra.mxu0 %v344
    %369 = vmatprep.subr.mxu0 0.0
    %370 = vmatpush1.msra.mxu0 %v345
    %371 = vmatprep.subr.mxu0 0.0
    %372 = vmatpush1.msra.mxu0 %v346
    %373 = vmatprep.subr.mxu0 0.0
    %374 = vmatpush1.msra.mxu0 %v347
    %375 = vmatprep.subr.mxu0 0.0
    %376 = vmatpush1.msra.mxu0 %v348
    %377 = vmatprep.subr.mxu0 0.0
    %378 = vmatpush1.msra.mxu0 %v349
    %379 = vmatprep.subr.mxu0 0.0
    %380 = vmatpush1.msra.mxu0 %v350
    %381 = vmatprep.subr.mxu0 0.0
    %382 = vmatpush1.msra.mxu0 %v351
    %383 = vmatprep.subr.mxu0 0.0
    %384 = vmatpush1.msra.mxu0 %v352
    %385 = vmatprep.subr.mxu0 0.0
    %386 = vmatpush1.msra.mxu0 0.0
    %387 = vmatprep.subr.mxu0 0.0
    %388 = vmatpush1.msra.mxu0 0.0
    %389 = vmatprep.subr.mxu0 0.0
    %390 = vmatpush1.msra.mxu0 0.0
    %391 = vmatprep.subr.mxu0 0.0
    %392 = vmatpush1.msra.mxu0 0.0
    %393 = vmatprep.subr.mxu0 0.0
    %394 = vmatpush1.msra.mxu0 0.0
    %395 = vmatprep.subr.mxu0 0.0
    %396 = vmatpush1.msra.mxu0 0.0
    %397 = vmatprep.subr.mxu0 0.0
    %398 = vmatpush1.msra.mxu0 0.0
    %399 = vmatprep.subr.mxu0 0.0
    %400 = vmatpush1.msra.mxu0 0.0
    %401 = vmatprep.subr.mxu0 0.0
    %402 = vmatpush1.msra.mxu0 0.0
    %403 = vmatprep.subr.mxu0 0.0
    %404 = vmatpush1.msra.mxu0 0.0
    %405 = vmatprep.subr.mxu0 0.0
    %406 = vmatpush1.msra.mxu0 0.0
    %407 = vmatprep.subr.mxu0 0.0
    %408 = vmatpush1.msra.mxu0 0.0
    %409 = vmatprep.subr.mxu0 0.0
    %410 = vmatpush1.msra.mxu0 0.0
    %411 = vmatprep.subr.mxu0 0.0
    %412 = vmatpush1.msra.mxu0 0.0
    %413 = vmatprep.subr.mxu0 0.0
    %414 = vmatpush1.msra.mxu0 0.0
    %415 = vmatprep.subr.mxu0 0.0
    %416 = vmatpush1.msra.mxu0 0.0
    %417 = vmatprep.mubr.f32.mxu0 0.0
    %418 = vmatmul.mubr.f32.gmra.mrb[0].mxu0 %v140
    %v419 = vpop.f32.mrb[0].mxu0
    %v420 = vadd.f32 0.0, %v419
    %v421 = vpop.f32.mrb[0].mxu0
    %422 = vmatprep.mubr.f32.mxu0 0.0
    %423 = vmatmul.mubr.f32.gmra.mrb[0].mxu0 %v141
    %v424 = vpop.f32.mrb[0].mxu0
    %v425 = vadd.f32 0.0, %v424
    %v426 = vpop.f32.mrb[0].mxu0
    %427 = vmatprep.mubr.f32.mxu0 0.0
    %428 = vmatmul.mubr.f32.gmra.mrb[0].mxu0 %v142
    %v429 = vpop.f32.mrb[0].mxu0
    %v430 = vadd.f32 0.0, %v429
    %v431 = vpop.f32.mrb[0].mxu0
    %432 = vmatprep.mubr.f32.mxu0 0.0
    %433 = vmatmul.mubr.f32.gmra.mrb[0].mxu0 %v143
    %v434 = vpop.f32.mrb[0].mxu0
    %v435 = vadd.f32 0.0, %v434
    %v436 = vpop.f32.mrb[0].mxu0
    %437 = vmatprep.mubr.f32.mxu0 0.0
    %438 = vmatmul.mubr.f32.gmra.mrb[0].mxu0 %v144
    %v439 = vpop.f32.mrb[0].mxu0
    %v440 = vadd.f32 0.0, %v439
    %v441 = vpop.f32.mrb[0].mxu0
    %442 = vmatprep.mubr.f32.mxu0 0.0
    %443 = vmatmul.mubr.f32.gmra.mrb[0].mxu0 %v145
    %v444 = vpop.f32.mrb[0].mxu0
    %v445 = vadd.f32 0.0, %v444
    %v446 = vpop.f32.mrb[0].mxu0
    %447 = vmatprep.mubr.f32.mxu0 0.0
    %448 = vmatmul.mubr.f32.gmra.mrb[0].mxu0 %v146
    %v449 = vpop.f32.mrb[0].mxu0
    %v450 = vadd.f32 0.0, %v449
    %v451 = vpop.f32.mrb[0].mxu0
    %452 = vmatprep.mubr.f32.mxu0 0.0
    %453 = vmatmul.mubr.f32.gmra.mrb[0].mxu0 %v147
    %v454 = vpop.f32.mrb[0].mxu0
    %v455 = vadd.f32 0.0, %v454
    %v456 = vpop.f32.mrb[0].mxu0
    %457 = vmatprep.mubr.f32.mxu0 0.0
    %458 = vmatmul.mubr.f32.gmra.mrb[0].mxu0 %v148
    %v459 = vpop.f32.mrb[0].mxu0
    %v460 = vadd.f32 0.0, %v459
    %v461 = vpop.f32.mrb[0].mxu0
    %462 = vmatprep.mubr.f32.mxu0 0.0
    %463 = vmatmul.mubr.f32.gmra.mrb[0].mxu0 %v149
    %v464 = vpop.f32.mrb[0].mxu0
    %v465 = vadd.f32 0.0, %v464
    %v466 = vpop.f32.mrb[0].mxu0
    %467 = vmatprep.mubr.f32.mxu0 0.0
    %468 = vmatmul.mubr.f32.gmra.mrb[0].mxu0 %v150
    %v469 = vpop.f32.mrb[0].mxu0
    %v470 = vadd.f32 0.0, %v469
    %v471 = vpop.f32.mrb[0].mxu0
    %472 = vmatprep.mubr.f32.mxu0 0.0
    %473 = vmatmul.mubr.f32.gmra.mrb[0].mxu0 %v151
    %v474 = vpop.f32.mrb[0].mxu0
    %v475 = vadd.f32 0.0, %v474
    %v476 = vpop.f32.mrb[0].mxu0
    %477 = vmatprep.mubr.f32.mxu0 0.0
    %478 = vmatmul.mubr.f32.gmra.mrb[0].mxu0 %v152
    %v479 = vpop.f32.mrb[0].mxu0
    %v480 = vadd.f32 0.0, %v479
    %v481 = vpop.f32.mrb[0].mxu0
    %482 = vmatprep.mubr.f32.mxu0 0.0
    %483 = vmatmul.mubr.f32.gmra.mrb[0].mxu0 %v153
    %v484 = vpop.f32.mrb[0].mxu0
    %v485 = vadd.f32 0.0, %v484
    %v486 = vpop.f32.mrb[0].mxu0
    %487 = vmatprep.mubr.f32.mxu0 0.0
    %488 = vmatmul.mubr.f32.gmra.mrb[0].mxu0 %v154
    %v489 = vpop.f32.mrb[0].mxu0
    %v490 = vadd.f32 0.0, %v489
    %v491 = vpop.f32.mrb[0].mxu0
    %492 = vmatprep.mubr.f32.mxu0 0.0
    %493 = vmatmul.mubr.f32.gmra.mrb[0].mxu0 %v155
    %v494 = vpop.f32.mrb[0].mxu0
    %v495 = vadd.f32 0.0, %v494
    %v496 = vpop.f32.mrb[0].mxu0
    %497 = vdwg.mxu0
    %498 = vmatprep.subr.mxu0 0.0
    %499 = vmatpush1.xpose.msra.mxu0 %v140
    %500 = vmatprep.subr.mxu0 0.0
    %501 = vmatpush1.xpose.msra.mxu0 %v141
    %502 = vmatprep.subr.mxu0 0.0
    %503 = vmatpush1.xpose.msra.mxu0 %v142
    %504 = vmatprep.subr.mxu0 0.0
    %505 = vmatpush1.xpose.msra.mxu0 %v143
    %506 = vmatprep.subr.mxu0 0.0
    %507 = vmatpush1.xpose.msra.mxu0 %v144
    %508 = vmatprep.subr.mxu0 0.0
    %509 = vmatpush1.xpose.msra.mxu0 %v145
    %510 = vmatprep.subr.mxu0 0.0
    %511 = vmatpush1.xpose.msra.mxu0 %v146
    %512 = vmatprep.subr.mxu0 0.0
    %513 = vmatpush1.xpose.msra.mxu0 %v147
    %514 = vmatprep.subr.mxu0 0.0
    %515 = vmatpush1.xpose.msra.mxu0 %v148
    %516 = vmatprep.subr.mxu0 0.0
    %517 = vmatpush1.xpose.msra.mxu0 %v149
    %518 = vmatprep.subr.mxu0 0.0
    %519 = vmatpush1.xpose.msra.mxu0 %v150
    %520 = vmatprep.subr.mxu0 0.0
    %521 = vmatpush1.xpose.msra.mxu0 %v151
    %522 = vmatprep.subr.mxu0 0.0
    %523 = vmatpush1.xpose.msra.mxu0 %v152
    %524 = vmatprep.subr.mxu0 0.0
    %525 = vmatpush1.xpose.msra.mxu0 %v153
    %526 = vmatprep.subr.mxu0 0.0
    %527 = vmatpush1.xpose.msra.mxu0 %v154
    %528 = vmatprep.subr.mxu0 0.0
    %529 = vmatpush1.xpose.msra.mxu0 %v155
    %530 = vmatprep.subr.mxu0 0.0
    %531 = vmatpush1.xpose.msra.mxu0 0.0
    %532 = vmatprep.subr.mxu0 0.0
    %533 = vmatpush1.xpose.msra.mxu0 0.0
    %534 = vmatprep.subr.mxu0 0.0
    %535 = vmatpush1.xpose.msra.mxu0 0.0
    %536 = vmatprep.subr.mxu0 0.0
    %537 = vmatpush1.xpose.msra.mxu0 0.0
    %538 = vmatprep.subr.mxu0 0.0
    %539 = vmatpush1.xpose.msra.mxu0 0.0
    %540 = vmatprep.subr.mxu0 0.0
    %541 = vmatpush1.xpose.msra.mxu0 0.0
    %542 = vmatprep.subr.mxu0 0.0
    %543 = vmatpush1.xpose.msra.mxu0 0.0
    %544 = vmatprep.subr.mxu0 0.0
    %545 = vmatpush1.xpose.msra.mxu0 0.0
    %546 = vmatprep.subr.mxu0 0.0
    %547 = vmatpush1.xpose.msra.mxu0 0.0
    %548 = vmatprep.subr.mxu0 0.0
    %549 = vmatpush1.xpose.msra.mxu0 0.0
    %550 = vmatprep.subr.mxu0 0.0
    %551 = vmatpush1.xpose.msra.mxu0 0.0
    %552 = vmatprep.subr.mxu0 0.0
    %553 = vmatpush1.xpose.msra.mxu0 0.0
    %554 = vmatprep.subr.mxu0 0.0
    %555 = vmatpush1.xpose.msra.mxu0 0.0
    %556 = vmatprep.subr.mxu0 0.0
    %557 = vmatpush1.xpose.msra.mxu0 0.0
    %558 = vmatprep.subr.mxu0 0.0
    %559 = vmatpush1.xpose.msra.mxu0 0.0
    %560 = vmatprep.subr.mxu0 0.0
    %561 = vmatpush1.xpose.msra.mxu0 0.0
    %562 = vmatprep.mubr.f32.mxu0 0.0
    %563 = vmatmul.mubr.f32.gmra.mrb[0].mxu0 %v420
    %v564 = vpop.f32.mrb[0].mxu0
    %v565 = vadd.f32 0.0, %v564
    %v566 = vpop.f32.mrb[0].mxu0
    %567 = vmatprep.mubr.f32.mxu0 0.0
    %568 = vmatmul.mubr.f32.gmra.mrb[0].mxu0 %v425
    %v569 = vpop.f32.mrb[0].mxu0
    %v570 = vadd.f32 0.0, %v569
    %v571 = vpop.f32.mrb[0].mxu0
    %572 = vmatprep.mubr.f32.mxu0 0.0
    %573 = vmatmul.mubr.f32.gmra.mrb[0].mxu0 %v430
    %v574 = vpop.f32.mrb[0].mxu0
    %v575 = vadd.f32 0.0, %v574
    %v576 = vpop.f32.mrb[0].mxu0
    %577 = vmatprep.mubr.f32.mxu0 0.0
    %578 = vmatmul.mubr.f32.gmra.mrb[0].mxu0 %v435
    %v579 = vpop.f32.mrb[0].mxu0
    %v580 = vadd.f32 0.0, %v579
    %v581 = vpop.f32.mrb[0].mxu0
    %582 = vmatprep.mubr.f32.mxu0 0.0
    %583 = vmatmul.mubr.f32.gmra.mrb[0].mxu0 %v440
    %v584 = vpop.f32.mrb[0].mxu0
    %v585 = vadd.f32 0.0, %v584
    %v586 = vpop.f32.mrb[0].mxu0
    %587 = vmatprep.mubr.f32.mxu0 0.0
    %588 = vmatmul.mubr.f32.gmra.mrb[0].mxu0 %v445
    %v589 = vpop.f32.mrb[0].mxu0
    %v590 = vadd.f32 0.0, %v589
    %v591 = vpop.f32.mrb[0].mxu0
    %592 = vmatprep.mubr.f32.mxu0 0.0
    %593 = vmatmul.mubr.f32.gmra.mrb[0].mxu0 %v450
    %v594 = vpop.f32.mrb[0].mxu0
    %v595 = vadd.f32 0.0, %v594
    %v596 = vpop.f32.mrb[0].mxu0
    %597 = vmatprep.mubr.f32.mxu0 0.0
    %598 = vmatmul.mubr.f32.gmra.mrb[0].mxu0 %v455
    %v599 = vpop.f32.mrb[0].mxu0
    %v600 = vadd.f32 0.0, %v599
    %v601 = vpop.f32.mrb[0].mxu0
    %602 = vmatprep.mubr.f32.mxu0 0.0
    %603 = vmatmul.mubr.f32.gmra.mrb[0].mxu0 %v460
    %v604 = vpop.f32.mrb[0].mxu0
    %v605 = vadd.f32 0.0, %v604
    %v606 = vpop.f32.mrb[0].mxu0
    %607 = vmatprep.mubr.f32.mxu0 0.0
    %608 = vmatmul.mubr.f32.gmra.mrb[0].mxu0 %v465
    %v609 = vpop.f32.mrb[0].mxu0
    %v610 = vadd.f32 0.0, %v609
    %v611 = vpop.f32.mrb[0].mxu0
    %612 = vmatprep.mubr.f32.mxu0 0.0
    %613 = vmatmul.mubr.f32.gmra.mrb[0].mxu0 %v470
    %v614 = vpop.f32.mrb[0].mxu0
    %v615 = vadd.f32 0.0, %v614
    %v616 = vpop.f32.mrb[0].mxu0
    %617 = vmatprep.mubr.f32.mxu0 0.0
    %618 = vmatmul.mubr.f32.gmra.mrb[0].mxu0 %v475
    %v619 = vpop.f32.mrb[0].mxu0
    %v620 = vadd.f32 0.0, %v619
    %v621 = vpop.f32.mrb[0].mxu0
    %622 = vmatprep.mubr.f32.mxu0 0.0
    %623 = vmatmul.mubr.f32.gmra.mrb[0].mxu0 %v480
    %v624 = vpop.f32.mrb[0].mxu0
    %v625 = vadd.f32 0.0, %v624
    %v626 = vpop.f32.mrb[0].mxu0
    %627 = vmatprep.mubr.f32.mxu0 0.0
    %628 = vmatmul.mubr.f32.gmra.mrb[0].mxu0 %v485
    %v629 = vpop.f32.mrb[0].mxu0
    %v630 = vadd.f32 0.0, %v629
    %v631 = vpop.f32.mrb[0].mxu0
    %632 = vmatprep.mubr.f32.mxu0 0.0
    %633 = vmatmul.mubr.f32.gmra.mrb[0].mxu0 %v490
    %v634 = vpop.f32.mrb[0].mxu0
    %v635 = vadd.f32 0.0, %v634
    %v636 = vpop.f32.mrb[0].mxu0
    %637 = vmatprep.mubr.f32.mxu0 0.0
    %638 = vmatmul.mubr.f32.gmra.mrb[0].mxu0 %v495
    %v639 = vpop.f32.mrb[0].mxu0
    %v640 = vadd.f32 0.0, %v639
    %v641 = vpop.f32.mrb[0].mxu0
    %642 = vdwg.mxu0
    %643 = vst [vmem:[#allocation2] sm:$0xff] %v565
    %644 = vst [vmem:[#allocation2 + $0x8] sm:$0xff] %v570
    %645 = vst [vmem:[#allocation2 + $0x10] sm:$0xff] %v575
    %646 = vst [vmem:[#allocation2 + $0x18] sm:$0xff] %v580
    %647 = vst [vmem:[#allocation2 + $0x20] sm:$0xff] %v585
    %648 = vst [vmem:[#allocation2 + $0x28] sm:$0xff] %v590
    %649 = vst [vmem:[#allocation2 + $0x30] sm:$0xff] %v595
    %650 = vst [vmem:[#allocation2 + $0x38] sm:$0xff] %v600
    %651 = vst [vmem:[#allocation2 + $0x40] sm:$0xff] %v605
    %652 = vst [vmem:[#allocation2 + $0x48] sm:$0xff] %v610
    %653 = vst [vmem:[#allocation2 + $0x50] sm:$0xff] %v615
    %654 = vst [vmem:[#allocation2 + $0x58] sm:$0xff] %v620
    %655 = vst [vmem:[#allocation2 + $0x60] sm:$0xff] %v625
    %656 = vst [vmem:[#allocation2 + $0x68] sm:$0xff] %v630
    %657 = vst [vmem:[#allocation2 + $0x70] sm:$0xff] %v635
    %658 = vst [vmem:[#allocation2 + $0x78] sm:$0xff] %v640
    %s659 = smul.u32 0, 6
    %s660 = sld [smem:[#allocation5 + %s659]]
    %s661 = scalar_lea.vmem [#allocation2], %s660
    %v662 = vld [vmem:[%s661] sm:$0x1]
    %663 = vst [vmem:[#allocation12] sm:$0x1] %v662
    %s664 = sadd.s32 %s659, 1
    %s665 = sld [smem:[#allocation5 + %s664]]
    %s666 = scalar_lea.vmem [#allocation2], %s665
    %v667 = vld [vmem:[%s666] sm:$0x1]
    %668 = vst [vmem:[#allocation12 + $0x1] sm:$0x1] %v667
    %s669 = sadd.s32 %s139, 1
    %s670 = scalar_lea.vmem [#allocation9], 128
    %v671 = vld [vmem:[%s670] sm:$0xff]
    %v672 = vld [vmem:[%s670 + $0x8] sm:$0xff]
    %v673 = vld [vmem:[%s670 + $0x10] sm:$0xff]
    %v674 = vld [vmem:[%s670 + $0x18] sm:$0xff]
    %v675 = vld [vmem:[%s670 + $0x20] sm:$0xff]
    %v676 = vld [vmem:[%s670 + $0x28] sm:$0xff]
    %v677 = vld [vmem:[%s670 + $0x30] sm:$0xff]
    %v678 = vld [vmem:[%s670 + $0x38] sm:$0xff]
    %v679 = vld [vmem:[%s670 + $0x40] sm:$0xff]
    %v680 = vld [vmem:[%s670 + $0x48] sm:$0xff]
    %v681 = vld [vmem:[%s670 + $0x50] sm:$0xff]
    %v682 = vld [vmem:[%s670 + $0x58] sm:$0xff]
    %v683 = vld [vmem:[%s670 + $0x60] sm:$0xff]
    %v684 = vld [vmem:[%s670 + $0x68] sm:$0xff]
    %v685 = vld [vmem:[%s670 + $0x70] sm:$0xff]
    %v686 = vld [vmem:[%s670 + $0x78] sm:$0xff]
    %v687 = vld [vmem:[#allocation3] sm:$0xff]
    %v688 = vld [vmem:[#allocation3 + $0x8] sm:$0xff]
    %v689 = vld [vmem:[#allocation3 + $0x10] sm:$0xff]
    %v690 = vld [vmem:[#allocation3 + $0x18] sm:$0xff]
    %v691 = vld [vmem:[#allocation3 + $0x20] sm:$0xff]
    %v692 = vld [vmem:[#allocation3 + $0x28] sm:$0xff]
    %v693 = vld [vmem:[#allocation3 + $0x30] sm:$0xff]
    %v694 = vld [vmem:[#allocation3 + $0x38] sm:$0xff]
    %v695 = vld [vmem:[#allocation3 + $0x40] sm:$0xff]
    %v696 = vld [vmem:[#allocation3 + $0x48] sm:$0xff]
    %v697 = vld [vmem:[#allocation3 + $0x50] sm:$0xff]
    %v698 = vld [vmem:[#allocation3 + $0x58] sm:$0xff]
    %v699 = vld [vmem:[#allocation3 + $0x60] sm:$0xff]
    %v700 = vld [vmem:[#allocation3 + $0x68] sm:$0xff]
    %v701 = vld [vmem:[#allocation3 + $0x70] sm:$0xff]
    %v702 = vld [vmem:[#allocation3 + $0x78] sm:$0xff]
    %703 = vmatprep.subr.mxu0 0.0
    %704 = vmatpush1.msra.mxu0 %v687
    %705 = vmatprep.subr.mxu0 0.0
    %706 = vmatpush1.msra.mxu0 %v688
    %707 = vmatprep.subr.mxu0 0.0
    %708 = vmatpush1.msra.mxu0 %v689
    %709 = vmatprep.subr.mxu0 0.0
    %710 = vmatpush1.msra.mxu0 %v690
    %711 = vmatprep.subr.mxu0 0.0
    %712 = vmatpush1.msra.mxu0 %v691
    %713 = vmatprep.subr.mxu0 0.0
    %714 = vmatpush1.msra.mxu0 %v692
    %715 = vmatprep.subr.mxu0 0.0
    %716 = vmatpush1.msra.mxu0 %v693
    %717 = vmatprep.subr.mxu0 0.0
    %718 = vmatpush1.msra.mxu0 %v694
    %719 = vmatprep.subr.mxu0 0.0
    %720 = vmatpush1.msra.mxu0 %v695
    %721 = vmatprep.subr.mxu0 0.0
    %722 = vmatpush1.msra.mxu0 %v696
    %723 = vmatprep.subr.mxu0 0.0
    %724 = vmatpush1.msra.mxu0 %v697
    %725 = vmatprep.subr.mxu0 0.0
    %726 = vmatpush1.msra.mxu0 %v698
    %727 = vmatprep.subr.mxu0 0.0
    %728 = vmatpush1.msra.mxu0 %v699
    %729 = vmatprep.subr.mxu0 0.0
    %730 = vmatpush1.msra.mxu0 %v700
    %731 = vmatprep.subr.mxu0 0.0
    %732 = vmatpush1.msra.mxu0 %v701
    %733 = vmatprep.subr.mxu0 0.0
    %734 = vmatpush1.msra.mxu0 %v702
    %735 = vmatprep.subr.mxu0 0.0
    %736 = vmatpush1.msra.mxu0 0.0
    %737 = vmatprep.subr.mxu0 0.0
    %738 = vmatpush1.msra.mxu0 0.0
    %739 = vmatprep.subr.mxu0 0.0
    %740 = vmatpush1.msra.mxu0 0.0
    %741 = vmatprep.subr.mxu0 0.0
    %742 = vmatpush1.msra.mxu0 0.0
    %743 = vmatprep.subr.mxu0 0.0
    %744 = vmatpush1.msra.mxu0 0.0
    %745 = vmatprep.subr.mxu0 0.0
    %746 = vmatpush1.msra.mxu0 0.0
    %747 = vmatprep.subr.mxu0 0.0
    %748 = vmatpush1.msra.mxu0 0.0
    %749 = vmatprep.subr.mxu0 0.0
    %750 = vmatpush1.msra.mxu0 0.0
    %751 = vmatprep.subr.mxu0 0.0
    %752 = vmatpush1.msra.mxu0 0.0
    %753 = vmatprep.subr.mxu0 0.0
    %754 = vmatpush1.msra.mxu0 0.0
    %755 = vmatprep.subr.mxu0 0.0
    %756 = vmatpush1.msra.mxu0 0.0
    %757 = vmatprep.subr.mxu0 0.0
    %758 = vmatpush1.msra.mxu0 0.0
    %759 = vmatprep.subr.mxu0 0.0
    %760 = vmatpush1.msra.mxu0 0.0
    %761 = vmatprep.subr.mxu0 0.0
    %762 = vmatpush1.msra.mxu0 0.0
    %763 = vmatprep.subr.mxu0 0.0
    %764 = vmatpush1.msra.mxu0 0.0
    %765 = vmatprep.subr.mxu0 0.0
    %766 = vmatpush1.msra.mxu0 0.0
    %767 = vmatprep.mubr.f32.mxu0 0.0
    %768 = vmatmul.mubr.f32.gmra.mrb[0].mxu0 %v671
    %v769 = vpop.f32.mrb[0].mxu0
    %v770 = vadd.f32 0.0, %v769
    %v771 = vpop.f32.mrb[0].mxu0
    %772 = vmatprep.mubr.f32.mxu0 0.0
    %773 = vmatmul.mubr.f32.gmra.mrb[0].mxu0 %v672
    %v774 = vpop.f32.mrb[0].mxu0
    %v775 = vadd.f32 0.0, %v774
    %v776 = vpop.f32.mrb[0].mxu0
    %777 = vmatprep.mubr.f32.mxu0 0.0
    %778 = vmatmul.mubr.f32.gmra.mrb[0].mxu0 %v673
    %v779 = vpop.f32.mrb[0].mxu0
    %v780 = vadd.f32 0.0, %v779
    %v781 = vpop.f32.mrb[0].mxu0
    %782 = vmatprep.mubr.f32.mxu0 0.0
    %783 = vmatmul.mubr.f32.gmra.mrb[0].mxu0 %v674
    %v784 = vpop.f32.mrb[0].mxu0
    %v785 = vadd.f32 0.0, %v784
    %v786 = vpop.f32.mrb[0].mxu0
    %787 = vmatprep.mubr.f32.mxu0 0.0
    %788 = vmatmul.mubr.f32.gmra.mrb[0].mxu0 %v675
    %v789 = vpop.f32.mrb[0].mxu0
    %v790 = vadd.f32 0.0, %v789
    %v791 = vpop.f32.mrb[0].mxu0
    %792 = vmatprep.mubr.f32.mxu0 0.0
    %793 = vmatmul.mubr.f32.gmra.mrb[0].mxu0 %v676
    %v794 = vpop.f32.mrb[0].mxu0
    %v795 = vadd.f32 0.0, %v794
    %v796 = vpop.f32.mrb[0].mxu0
    %797 = vmatprep.mubr.f32.mxu0 0.0
    %798 = vmatmul.mubr.f32.gmra.mrb[0].mxu0 %v677
    %v799 = vpop.f32.mrb[0].mxu0
    %v800 = vadd.f32 0.0, %v799
    %v801 = vpop.f32.mrb[0].mxu0
    %802 = vmatprep.mubr.f32.mxu0 0.0
    %803 = vmatmul.mubr.f32.gmra.mrb[0].mxu0 %v678
    %v804 = vpop.f32.mrb[0].mxu0
    %v805 = vadd.f32 0.0, %v804
    %v806 = vpop.f32.mrb[0].mxu0
    %807 = vmatprep.mubr.f32.mxu0 0.0
    %808 = vmatmul.mubr.f32.gmra.mrb[0].mxu0 %v679
    %v809 = vpop.f32.mrb[0].mxu0
    %v810 = vadd.f32 0.0, %v809
    %v811 = vpop.f32.mrb[0].mxu0
    %812 = vmatprep.mubr.f32.mxu0 0.0
    %813 = vmatmul.mubr.f32.gmra.mrb[0].mxu0 %v680
    %v814 = vpop.f32.mrb[0].mxu0
    %v815 = vadd.f32 0.0, %v814
    %v816 = vpop.f32.mrb[0].mxu0
    %817 = vmatprep.mubr.f32.mxu0 0.0
    %818 = vmatmul.mubr.f32.gmra.mrb[0].mxu0 %v681
    %v819 = vpop.f32.mrb[0].mxu0
    %v820 = vadd.f32 0.0, %v819
    %v821 = vpop.f32.mrb[0].mxu0
    %822 = vmatprep.mubr.f32.mxu0 0.0
    %823 = vmatmul.mubr.f32.gmra.mrb[0].mxu0 %v682
    %v824 = vpop.f32.mrb[0].mxu0
    %v825 = vadd.f32 0.0, %v824
    %v826 = vpop.f32.mrb[0].mxu0
    %827 = vmatprep.mubr.f32.mxu0 0.0
    %828 = vmatmul.mubr.f32.gmra.mrb[0].mxu0 %v683
    %v829 = vpop.f32.mrb[0].mxu0
    %v830 = vadd.f32 0.0, %v829
    %v831 = vpop.f32.mrb[0].mxu0
    %832 = vmatprep.mubr.f32.mxu0 0.0
    %833 = vmatmul.mubr.f32.gmra.mrb[0].mxu0 %v684
    %v834 = vpop.f32.mrb[0].mxu0
    %v835 = vadd.f32 0.0, %v834
    %v836 = vpop.f32.mrb[0].mxu0
    %837 = vmatprep.mubr.f32.mxu0 0.0
    %838 = vmatmul.mubr.f32.gmra.mrb[0].mxu0 %v685
    %v839 = vpop.f32.mrb[0].mxu0
    %v840 = vadd.f32 0.0, %v839
    %v841 = vpop.f32.mrb[0].mxu0
    %842 = vmatprep.mubr.f32.mxu0 0.0
    %843 = vmatmul.mubr.f32.gmra.mrb[0].mxu0 %v686
    %v844 = vpop.f32.mrb[0].mxu0
    %v845 = vadd.f32 0.0, %v844
    %v846 = vpop.f32.mrb[0].mxu0
    %847 = vdwg.mxu0
    %848 = vst [vmem:[#allocation3] sm:$0xff] %v770
    %849 = vst [vmem:[#allocation3 + $0x8] sm:$0xff] %v775
    %850 = vst [vmem:[#allocation3 + $0x10] sm:$0xff] %v780
    %851 = vst [vmem:[#allocation3 + $0x18] sm:$0xff] %v785
    %852 = vst [vmem:[#allocation3 + $0x20] sm:$0xff] %v790
    %853 = vst [vmem:[#allocation3 + $0x28] sm:$0xff] %v795
    %854 = vst [vmem:[#allocation3 + $0x30] sm:$0xff] %v800
    %855 = vst [vmem:[#allocation3 + $0x38] sm:$0xff] %v805
    %856 = vst [vmem:[#allocation3 + $0x40] sm:$0xff] %v810
    %857 = vst [vmem:[#allocation3 + $0x48] sm:$0xff] %v815
    %858 = vst [vmem:[#allocation3 + $0x50] sm:$0xff] %v820
    %859 = vst [vmem:[#allocation3 + $0x58] sm:$0xff] %v825
    %860 = vst [vmem:[#allocation3 + $0x60] sm:$0xff] %v830
    %861 = vst [vmem:[#allocation3 + $0x68] sm:$0xff] %v835
    %862 = vst [vmem:[#allocation3 + $0x70] sm:$0xff] %v840
    %863 = vst [vmem:[#allocation3 + $0x78] sm:$0xff] %v845
    %v864 = vld [vmem:[#allocation2] sm:$0xff]
    %v865 = vld [vmem:[#allocation2 + $0x8] sm:$0xff]
    %v866 = vld [vmem:[#allocation2 + $0x10] sm:$0xff]
    %v867 = vld [vmem:[#allocation2 + $0x18] sm:$0xff]
    %v868 = vld [vmem:[#allocation2 + $0x20] sm:$0xff]
    %v869 = vld [vmem:[#allocation2 + $0x28] sm:$0xff]
    %v870 = vld [vmem:[#allocation2 + $0x30] sm:$0xff]
    %v871 = vld [vmem:[#allocation2 + $0x38] sm:$0xff]
    %v872 = vld [vmem:[#allocation2 + $0x40] sm:$0xff]
    %v873 = vld [vmem:[#allocation2 + $0x48] sm:$0xff]
    %v874 = vld [vmem:[#allocation2 + $0x50] sm:$0xff]
    %v875 = vld [vmem:[#allocation2 + $0x58] sm:$0xff]
    %v876 = vld [vmem:[#allocation2 + $0x60] sm:$0xff]
    %v877 = vld [vmem:[#allocation2 + $0x68] sm:$0xff]
    %v878 = vld [vmem:[#allocation2 + $0x70] sm:$0xff]
    %v879 = vld [vmem:[#allocation2 + $0x78] sm:$0xff]
    %880 = vmatprep.subr.mxu0 0.0
    %881 = vmatpush1.msra.mxu0 %v864
    %882 = vmatprep.subr.mxu0 0.0
    %883 = vmatpush1.msra.mxu0 %v865
    %884 = vmatprep.subr.mxu0 0.0
    %885 = vmatpush1.msra.mxu0 %v866
    %886 = vmatprep.subr.mxu0 0.0
    %887 = vmatpush1.msra.mxu0 %v867
    %888 = vmatprep.subr.mxu0 0.0
    %889 = vmatpush1.msra.mxu0 %v868
    %890 = vmatprep.subr.mxu0 0.0
    %891 = vmatpush1.msra.mxu0 %v869
    %892 = vmatprep.subr.mxu0 0.0
    %893 = vmatpush1.msra.mxu0 %v870
    %894 = vmatprep.subr.mxu0 0.0
    %895 = vmatpush1.msra.mxu0 %v871
    %896 = vmatprep.subr.mxu0 0.0
    %897 = vmatpush1.msra.mxu0 %v872
    %898 = vmatprep.subr.mxu0 0.0
    %899 = vmatpush1.msra.mxu0 %v873
    %900 = vmatprep.subr.mxu0 0.0
    %901 = vmatpush1.msra.mxu0 %v874
    %902 = vmatprep.subr.mxu0 0.0
    %903 = vmatpush1.msra.mxu0 %v875
    %904 = vmatprep.subr.mxu0 0.0
    %905 = vmatpush1.msra.mxu0 %v876
    %906 = vmatprep.subr.mxu0 0.0
    %907 = vmatpush1.msra.mxu0 %v877
    %908 = vmatprep.subr.mxu0 0.0
    %909 = vmatpush1.msra.mxu0 %v878
    %910 = vmatprep.subr.mxu0 0.0
    %911 = vmatpush1.msra.mxu0 %v879
    %912 = vmatprep.subr.mxu0 0.0
    %913 = vmatpush1.msra.mxu0 0.0
    %914 = vmatprep.subr.mxu0 0.0
    %915 = vmatpush1.msra.mxu0 0.0
    %916 = vmatprep.subr.mxu0 0.0
    %917 = vmatpush1.msra.mxu0 0.0
    %918 = vmatprep.subr.mxu0 0.0
    %919 = vmatpush1.msra.mxu0 0.0
    %920 = vmatprep.subr.mxu0 0.0
    %921 = vmatpush1.msra.mxu0 0.0
    %922 = vmatprep.subr.mxu0 0.0
    %923 = vmatpush1.msra.mxu0 0.0
    %924 = vmatprep.subr.mxu0 0.0
    %925 = vmatpush1.msra.mxu0 0.0
    %926 = vmatprep.subr.mxu0 0.0
    %927 = vmatpush1.msra.mxu0 0.0
    %928 = vmatprep.subr.mxu0 0.0
    %929 = vmatpush1.msra.mxu0 0.0
    %930 = vmatprep.subr.mxu0 0.0
    %931 = vmatpush1.msra.mxu0 0.0
    %932 = vmatprep.subr.mxu0 0.0
    %933 = vmatpush1.msra.mxu0 0.0
    %934 = vmatprep.subr.mxu0 0.0
    %935 = vmatpush1.msra.mxu0 0.0
    %936 = vmatprep.subr.mxu0 0.0
    %937 = vmatpush1.msra.mxu0 0.0
    %938 = vmatprep.subr.mxu0 0.0
    %939 = vmatpush1.msra.mxu0 0.0
    %940 = vmatprep.subr.mxu0 0.0
    %941 = vmatpush1.msra.mxu0 0.0
    %942 = vmatprep.subr.mxu0 0.0
    %943 = vmatpush1.msra.mxu0 0.0
    %944 = vmatprep.mubr.f32.mxu0 0.0
    %945 = vmatmul.mubr.f32.gmra.mrb[0].mxu0 %v671
    %v946 = vpop.f32.mrb[0].mxu0
    %v947 = vadd.f32 0.0, %v946
    %v948 = vpop.f32.mrb[0].mxu0
    %949 = vmatprep.mubr.f32.mxu0 0.0
    %950 = vmatmul.mubr.f32.gmra.mrb[0].mxu0 %v672
    %v951 = vpop.f32.mrb[0].mxu0
    %v952 = vadd.f32 0.0, %v951
    %v953 = vpop.f32.mrb[0].mxu0
    %954 = vmatprep.mubr.f32.mxu0 0.0
    %955 = vmatmul.mubr.f32.gmra.mrb[0].mxu0 %v673
    %v956 = vpop.f32.mrb[0].mxu0
    %v957 = vadd.f32 0.0, %v956
    %v958 = vpop.f32.mrb[0].mxu0
    %959 = vmatprep.mubr.f32.mxu0 0.0
    %960 = vmatmul.mubr.f32.gmra.mrb[0].mxu0 %v674
    %v961 = vpop.f32.mrb[0].mxu0
    %v962 = vadd.f32 0.0, %v961
    %v963 = vpop.f32.mrb[0].mxu0
    %964 = vmatprep.mubr.f32.mxu0 0.0
    %965 = vmatmul.mubr.f32.gmra.mrb[0].mxu0 %v675
    %v966 = vpop.f32.mrb[0].mxu0
    %v967 = vadd.f32 0.0, %v966
    %v968 = vpop.f32.mrb[0].mxu0
    %969 = vmatprep.mubr.f32.mxu0 0.0
    %970 = vmatmul.mubr.f32.gmra.mrb[0].mxu0 %v676
    %v971 = vpop.f32.mrb[0].mxu0
    %v972 = vadd.f32 0.0, %v971
    %v973 = vpop.f32.mrb[0].mxu0
    %974 = vmatprep.mubr.f32.mxu0 0.0
    %975 = vmatmul.mubr.f32.gmra.mrb[0].mxu0 %v677
    %v976 = vpop.f32.mrb[0].mxu0
    %v977 = vadd.f32 0.0, %v976
    %v978 = vpop.f32.mrb[0].mxu0
    %979 = vmatprep.mubr.f32.mxu0 0.0
    %980 = vmatmul.mubr.f32.gmra.mrb[0].mxu0 %v678
    %v981 = vpop.f32.mrb[0].mxu0
    %v982 = vadd.f32 0.0, %v981
    %v983 = vpop.f32.mrb[0].mxu0
    %984 = vmatprep.mubr.f32.mxu0 0.0
    %985 = vmatmul.mubr.f32.gmra.mrb[0].mxu0 %v679
    %v986 = vpop.f32.mrb[0].mxu0
    %v987 = vadd.f32 0.0, %v986
    %v988 = vpop.f32.mrb[0].mxu0
    %989 = vmatprep.mubr.f32.mxu0 0.0
    %990 = vmatmul.mubr.f32.gmra.mrb[0].mxu0 %v680
    %v991 = vpop.f32.mrb[0].mxu0
    %v992 = vadd.f32 0.0, %v991
    %v993 = vpop.f32.mrb[0].mxu0
    %994 = vmatprep.mubr.f32.mxu0 0.0
    %995 = vmatmul.mubr.f32.gmra.mrb[0].mxu0 %v681
    %v996 = vpop.f32.mrb[0].mxu0
    %v997 = vadd.f32 0.0, %v996
    %v998 = vpop.f32.mrb[0].mxu0
    %999 = vmatprep.mubr.f32.mxu0 0.0
    %1000 = vmatmul.mubr.f32.gmra.mrb[0].mxu0 %v682
    %v1001 = vpop.f32.mrb[0].mxu0
    %v1002 = vadd.f32 0.0, %v1001
    %v1003 = vpop.f32.mrb[0].mxu0
    %1004 = vmatprep.mubr.f32.mxu0 0.0
    %1005 = vmatmul.mubr.f32.gmra.mrb[0].mxu0 %v683
    %v1006 = vpop.f32.mrb[0].mxu0
    %v1007 = vadd.f32 0.0, %v1006
    %v1008 = vpop.f32.mrb[0].mxu0
    %1009 = vmatprep.mubr.f32.mxu0 0.0
    %1010 = vmatmul.mubr.f32.gmra.mrb[0].mxu0 %v684
    %v1011 = vpop.f32.mrb[0].mxu0
    %v1012 = vadd.f32 0.0, %v1011
    %v1013 = vpop.f32.mrb[0].mxu0
    %1014 = vmatprep.mubr.f32.mxu0 0.0
    %1015 = vmatmul.mubr.f32.gmra.mrb[0].mxu0 %v685
    %v1016 = vpop.f32.mrb[0].mxu0
    %v1017 = vadd.f32 0.0, %v1016
    %v1018 = vpop.f32.mrb[0].mxu0
    %1019 = vmatprep.mubr.f32.mxu0 0.0
    %1020 = vmatmul.mubr.f32.gmra.mrb[0].mxu0 %v686
    %v1021 = vpop.f32.mrb[0].mxu0
    %v1022 = vadd.f32 0.0, %v1021
    %v1023 = vpop.f32.mrb[0].mxu0
    %1024 = vdwg.mxu0
    %1025 = vmatprep.subr.mxu0 0.0
    %1026 = vmatpush1.xpose.msra.mxu0 %v671
    %1027 = vmatprep.subr.mxu0 0.0
    %1028 = vmatpush1.xpose.msra.mxu0 %v672
    %1029 = vmatprep.subr.mxu0 0.0
    %1030 = vmatpush1.xpose.msra.mxu0 %v673
    %1031 = vmatprep.subr.mxu0 0.0
    %1032 = vmatpush1.xpose.msra.mxu0 %v674
    %1033 = vmatprep.subr.mxu0 0.0
    %1034 = vmatpush1.xpose.msra.mxu0 %v675
    %1035 = vmatprep.subr.mxu0 0.0
    %1036 = vmatpush1.xpose.msra.mxu0 %v676
    %1037 = vmatprep.subr.mxu0 0.0
    %1038 = vmatpush1.xpose.msra.mxu0 %v677
    %1039 = vmatprep.subr.mxu0 0.0
    %1040 = vmatpush1.xpose.msra.mxu0 %v678
    %1041 = vmatprep.subr.mxu0 0.0
    %1042 = vmatpush1.xpose.msra.mxu0 %v679
    %1043 = vmatprep.subr.mxu0 0.0
    %1044 = vmatpush1.xpose.msra.mxu0 %v680
    %1045 = vmatprep.subr.mxu0 0.0
    %1046 = vmatpush1.xpose.msra.mxu0 %v681
    %1047 = vmatprep.subr.mxu0 0.0
    %1048 = vmatpush1.xpose.msra.mxu0 %v682
    %1049 = vmatprep.subr.mxu0 0.0
    %1050 = vmatpush1.xpose.msra.mxu0 %v683
    %1051 = vmatprep.subr.mxu0 0.0
    %1052 = vmatpush1.xpose.msra.mxu0 %v684
    %1053 = vmatprep.subr.mxu0 0.0
    %1054 = vmatpush1.xpose.msra.mxu0 %v685
    %1055 = vmatprep.subr.mxu0 0.0
    %1056 = vmatpush1.xpose.msra.mxu0 %v686
    %1057 = vmatprep.subr.mxu0 0.0
    %1058 = vmatpush1.xpose.msra.mxu0 0.0
    %1059 = vmatprep.subr.mxu0 0.0
    %1060 = vmatpush1.xpose.msra.mxu0 0.0
    %1061 = vmatprep.subr.mxu0 0.0
    %1062 = vmatpush1.xpose.msra.mxu0 0.0
    %1063 = vmatprep.subr.mxu0 0.0
    %1064 = vmatpush1.xpose.msra.mxu0 0.0
    %1065 = vmatprep.subr.mxu0 0.0
    %1066 = vmatpush1.xpose.msra.mxu0 0.0
    %1067 = vmatprep.subr.mxu0 0.0
    %1068 = vmatpush1.xpose.msra.mxu0 0.0
    %1069 = vmatprep.subr.mxu0 0.0
    %1070 = vmatpush1.xpose.msra.mxu0 0.0
    %1071 = vmatprep.subr.mxu0 0.0
    %1072 = vmatpush1.xpose.msra.mxu0 0.0
    %1073 = vmatprep.subr.mxu0 0.0
    %1074 = vmatpush1.xpose.msra.mxu0 0.0
    %1075 = vmatprep.subr.mxu0 0.0
    %1076 = vmatpush1.xpose.msra.mxu0 0.0
    %1077 = vmatprep.subr.mxu0 0.0
    %1078 = vmatpush1.xpose.msra.mxu0 0.0
    %1079 = vmatprep.subr.mxu0 0.0
    %1080 = vmatpush1.xpose.msra.mxu0 0.0
    %1081 = vmatprep.subr.mxu0 0.0
    %1082 = vmatpush1.xpose.msra.mxu0 0.0
    %1083 = vmatprep.subr.mxu0 0.0
    %1084 = vmatpush1.xpose.msra.mxu0 0.0
    %1085 = vmatprep.subr.mxu0 0.0
    %1086 = vmatpush1.xpose.msra.mxu0 0.0
    %1087 = vmatprep.subr.mxu0 0.0
    %1088 = vmatpush1.xpose.msra.mxu0 0.0
    %1089 = vmatprep.mubr.f32.mxu0 0.0
    %1090 = vmatmul.mubr.f32.gmra.mrb[0].mxu0 %v947
    %v1091 = vpop.f32.mrb[0].mxu0
    %v1092 = vadd.f32 0.0, %v1091
    %v1093 = vpop.f32.mrb[0].mxu0
    %1094 = vmatprep.mubr.f32.mxu0 0.0
    %1095 = vmatmul.mubr.f32.gmra.mrb[0].mxu0 %v952
    %v1096 = vpop.f32.mrb[0].mxu0
    %v1097 = vadd.f32 0.0, %v1096
    %v1098 = vpop.f32.mrb[0].mxu0
    %1099 = vmatprep.mubr.f32.mxu0 0.0
    %1100 = vmatmul.mubr.f32.gmra.mrb[0].mxu0 %v957
    %v1101 = vpop.f32.mrb[0].mxu0
    %v1102 = vadd.f32 0.0, %v1101
    %v1103 = vpop.f32.mrb[0].mxu0
    %1104 = vmatprep.mubr.f32.mxu0 0.0
    %1105 = vmatmul.mubr.f32.gmra.mrb[0].mxu0 %v962
    %v1106 = vpop.f32.mrb[0].mxu0
    %v1107 = vadd.f32 0.0, %v1106
    %v1108 = vpop.f32.mrb[0].mxu0
    %1109 = vmatprep.mubr.f32.mxu0 0.0
    %1110 = vmatmul.mubr.f32.gmra.mrb[0].mxu0 %v967
    %v1111 = vpop.f32.mrb[0].mxu0
    %v1112 = vadd.f32 0.0, %v1111
    %v1113 = vpop.f32.mrb[0].mxu0
    %1114 = vmatprep.mubr.f32.mxu0 0.0
    %1115 = vmatmul.mubr.f32.gmra.mrb[0].mxu0 %v972
    %v1116 = vpop.f32.mrb[0].mxu0
    %v1117 = vadd.f32 0.0, %v1116
    %v1118 = vpop.f32.mrb[0].mxu0
    %1119 = vmatprep.mubr.f32.mxu0 0.0
    %1120 = vmatmul.mubr.f32.gmra.mrb[0].mxu0 %v977
    %v1121 = vpop.f32.mrb[0].mxu0
    %v1122 = vadd.f32 0.0, %v1121
    %v1123 = vpop.f32.mrb[0].mxu0
    %1124 = vmatprep.mubr.f32.mxu0 0.0
    %1125 = vmatmul.mubr.f32.gmra.mrb[0].mxu0 %v982
    %v1126 = vpop.f32.mrb[0].mxu0
    %v1127 = vadd.f32 0.0, %v1126
    %v1128 = vpop.f32.mrb[0].mxu0
    %1129 = vmatprep.mubr.f32.mxu0 0.0
    %1130 = vmatmul.mubr.f32.gmra.mrb[0].mxu0 %v987
    %v1131 = vpop.f32.mrb[0].mxu0
    %v1132 = vadd.f32 0.0, %v1131
    %v1133 = vpop.f32.mrb[0].mxu0
    %1134 = vmatprep.mubr.f32.mxu0 0.0
    %1135 = vmatmul.mubr.f32.gmra.mrb[0].mxu0 %v992
    %v1136 = vpop.f32.mrb[0].mxu0
    %v1137 = vadd.f32 0.0, %v1136
    %v1138 = vpop.f32.mrb[0].mxu0
    %1139 = vmatprep.mubr.f32.mxu0 0.0
    %1140 = vmatmul.mubr.f32.gmra.mrb[0].mxu0 %v997
    %v1141 = vpop.f32.mrb[0].mxu0
    %v1142 = vadd.f32 0.0, %v1141
    %v1143 = vpop.f32.mrb[0].mxu0
    %1144 = vmatprep.mubr.f32.mxu0 0.0
    %1145 = vmatmul.mubr.f32.gmra.mrb[0].mxu0 %v1002
    %v1146 = vpop.f32.mrb[0].mxu0
    %v1147 = vadd.f32 0.0, %v1146
    %v1148 = vpop.f32.mrb[0].mxu0
    %1149 = vmatprep.mubr.f32.mxu0 0.0
    %1150 = vmatmul.mubr.f32.gmra.mrb[0].mxu0 %v1007
    %v1151 = vpop.f32.mrb[0].mxu0
    %v1152 = vadd.f32 0.0, %v1151
    %v1153 = vpop.f32.mrb[0].mxu0
    %1154 = vmatprep.mubr.f32.mxu0 0.0
    %1155 = vmatmul.mubr.f32.gmra.mrb[0].mxu0 %v1012
    %v1156 = vpop.f32.mrb[0].mxu0
    %v1157 = vadd.f32 0.0, %v1156
    %v1158 = vpop.f32.mrb[0].mxu0
    %1159 = vmatprep.mubr.f32.mxu0 0.0
    %1160 = vmatmul.mubr.f32.gmra.mrb[0].mxu0 %v1017
    %v1161 = vpop.f32.mrb[0].mxu0
    %v1162 = vadd.f32 0.0, %v1161
    %v1163 = vpop.f32.mrb[0].mxu0
    %1164 = vmatprep.mubr.f32.mxu0 0.0
    %1165 = vmatmul.mubr.f32.gmra.mrb[0].mxu0 %v1022
    %v1166 = vpop.f32.mrb[0].mxu0
    %v1167 = vadd.f32 0.0, %v1166
    %v1168 = vpop.f32.mrb[0].mxu0
    %1169 = vdwg.mxu0
    %1170 = vst [vmem:[#allocation2] sm:$0xff] %v1092
    %1171 = vst [vmem:[#allocation2 + $0x8] sm:$0xff] %v1097
    %1172 = vst [vmem:[#allocation2 + $0x10] sm:$0xff] %v1102
    %1173 = vst [vmem:[#allocation2 + $0x18] sm:$0xff] %v1107
    %1174 = vst [vmem:[#allocation2 + $0x20] sm:$0xff] %v1112
    %1175 = vst [vmem:[#allocation2 + $0x28] sm:$0xff] %v1117
    %1176 = vst [vmem:[#allocation2 + $0x30] sm:$0xff] %v1122
    %1177 = vst [vmem:[#allocation2 + $0x38] sm:$0xff] %v1127
    %1178 = vst [vmem:[#allocation2 + $0x40] sm:$0xff] %v1132
    %1179 = vst [vmem:[#allocation2 + $0x48] sm:$0xff] %v1137
    %1180 = vst [vmem:[#allocation2 + $0x50] sm:$0xff] %v1142
    %1181 = vst [vmem:[#allocation2 + $0x58] sm:$0xff] %v1147
    %1182 = vst [vmem:[#allocation2 + $0x60] sm:$0xff] %v1152
    %1183 = vst [vmem:[#allocation2 + $0x68] sm:$0xff] %v1157
    %1184 = vst [vmem:[#allocation2 + $0x70] sm:$0xff] %v1162
    %1185 = vst [vmem:[#allocation2 + $0x78] sm:$0xff] %v1167
    %s1186 = smul.u32 %s669, 2
    %s1187 = sld [smem:[#allocation5 + %s1186]]
    %s1188 = scalar_lea.vmem [#allocation2], %s1187
    %v1189 = vld [vmem:[%s1188] sm:$0x1]
    %s1190 = scalar_lea.vmem [#allocation12], 8
    %1191 = vst [vmem:[%s1190] sm:$0x1] %v1189
    %s1192 = sadd.s32 %s1186, 1
    %s1193 = sld [smem:[#allocation5 + %s1192]]
    %s1194 = scalar_lea.vmem [#allocation2], %s1193
    %v1195 = vld [vmem:[%s1194] sm:$0x1]
    %1196 = vst [vmem:[%s1190 + $0x1] sm:$0x1] %v1195
    %s1197 = sadd.s32 %s139, 2
    %s1198 = scalar_lea.vmem [#allocation9], 256
    %v1199 = vld [vmem:[%s1198] sm:$0xff]
    %v1200 = vld [vmem:[%s1198 + $0x8] sm:$0xff]
    %v1201 = vld [vmem:[%s1198 + $0x10] sm:$0xff]
    %v1202 = vld [vmem:[%s1198 + $0x18] sm:$0xff]
    %v1203 = vld [vmem:[%s1198 + $0x20] sm:$0xff]
    %v1204 = vld [vmem:[%s1198 + $0x28] sm:$0xff]
    %v1205 = vld [vmem:[%s1198 + $0x30] sm:$0xff]
    %v1206 = vld [vmem:[%s1198 + $0x38] sm:$0xff]
    %v1207 = vld [vmem:[%s1198 + $0x40] sm:$0xff]
    %v1208 = vld [vmem:[%s1198 + $0x48] sm:$0xff]
    %v1209 = vld [vmem:[%s1198 + $0x50] sm:$0xff]
    %v1210 = vld [vmem:[%s1198 + $0x58] sm:$0xff]
    %v1211 = vld [vmem:[%s1198 + $0x60] sm:$0xff]
    %v1212 = vld [vmem:[%s1198 + $0x68] sm:$0xff]
    %v1213 = vld [vmem:[%s1198 + $0x70] sm:$0xff]
    %v1214 = vld [vmem:[%s1198 + $0x78] sm:$0xff]
    %v1215 = vld [vmem:[#allocation3] sm:$0xff]
    %v1216 = vld [vmem:[#allocation3 + $0x8] sm:$0xff]
    %v1217 = vld [vmem:[#allocation3 + $0x10] sm:$0xff]
    %v1218 = vld [vmem:[#allocation3 + $0x18] sm:$0xff]
    %v1219 = vld [vmem:[#allocation3 + $0x20] sm:$0xff]
    %v1220 = vld [vmem:[#allocation3 + $0x28] sm:$0xff]
    %v1221 = vld [vmem:[#allocation3 + $0x30] sm:$0xff]
    %v1222 = vld [vmem:[#allocation3 + $0x38] sm:$0xff]
    %v1223 = vld [vmem:[#allocation3 + $0x40] sm:$0xff]
    %v1224 = vld [vmem:[#allocation3 + $0x48] sm:$0xff]
    %v1225 = vld [vmem:[#allocation3 + $0x50] sm:$0xff]
    %v1226 = vld [vmem:[#allocation3 + $0x58] sm:$0xff]
    %v1227 = vld [vmem:[#allocation3 + $0x60] sm:$0xff]
    %v1228 = vld [vmem:[#allocation3 + $0x68] sm:$0xff]
    %v1229 = vld [vmem:[#allocation3 + $0x70] sm:$0xff]
    %v1230 = vld [vmem:[#allocation3 + $0x78] sm:$0xff]
    %1231 = vmatprep.subr.mxu0 0.0
    %1232 = vmatpush1.msra.mxu0 %v1215
    %1233 = vmatprep.subr.mxu0 0.0
    %1234 = vmatpush1.msra.mxu0 %v1216
    %1235 = vmatprep.subr.mxu0 0.0
    %1236 = vmatpush1.msra.mxu0 %v1217
    %1237 = vmatprep.subr.mxu0 0.0
    %1238 = vmatpush1.msra.mxu0 %v1218
    %1239 = vmatprep.subr.mxu0 0.0
    %1240 = vmatpush1.msra.mxu0 %v1219
    %1241 = vmatprep.subr.mxu0 0.0
    %1242 = vmatpush1.msra.mxu0 %v1220
    %1243 = vmatprep.subr.mxu0 0.0
    %1244 = vmatpush1.msra.mxu0 %v1221
    %1245 = vmatprep.subr.mxu0 0.0
    %1246 = vmatpush1.msra.mxu0 %v1222
    %1247 = vmatprep.subr.mxu0 0.0
    %1248 = vmatpush1.msra.mxu0 %v1223
    %1249 = vmatprep.subr.mxu0 0.0
    %1250 = vmatpush1.msra.mxu0 %v1224
    %1251 = vmatprep.subr.mxu0 0.0
    %1252 = vmatpush1.msra.mxu0 %v1225
    %1253 = vmatprep.subr.mxu0 0.0
    %1254 = vmatpush1.msra.mxu0 %v1226
    %1255 = vmatprep.subr.mxu0 0.0
    %1256 = vmatpush1.msra.mxu0 %v1227
    %1257 = vmatprep.subr.mxu0 0.0
    %1258 = vmatpush1.msra.mxu0 %v1228
    %1259 = vmatprep.subr.mxu0 0.0
    %1260 = vmatpush1.msra.mxu0 %v1229
    %1261 = vmatprep.subr.mxu0 0.0
    %1262 = vmatpush1.msra.mxu0 %v1230
    %1263 = vmatprep.subr.mxu0 0.0
    %1264 = vmatpush1.msra.mxu0 0.0
    %1265 = vmatprep.subr.mxu0 0.0
    %1266 = vmatpush1.msra.mxu0 0.0
    %1267 = vmatprep.subr.mxu0 0.0
    %1268 = vmatpush1.msra.mxu0 0.0
    %1269 = vmatprep.subr.mxu0 0.0
    %1270 = vmatpush1.msra.mxu0 0.0
    %1271 = vmatprep.subr.mxu0 0.0
    %1272 = vmatpush1.msra.mxu0 0.0
    %1273 = vmatprep.subr.mxu0 0.0
    %1274 = vmatpush1.msra.mxu0 0.0
    %1275 = vmatprep.subr.mxu0 0.0
    %1276 = vmatpush1.msra.mxu0 0.0
    %1277 = vmatprep.subr.mxu0 0.0
    %1278 = vmatpush1.msra.mxu0 0.0
    %1279 = vmatprep.subr.mxu0 0.0
    %1280 = vmatpush1.msra.mxu0 0.0
    %1281 = vmatprep.subr.mxu0 0.0
    %1282 = vmatpush1.msra.mxu0 0.0
    %1283 = vmatprep.subr.mxu0 0.0
    %1284 = vmatpush1.msra.mxu0 0.0
    %1285 = vmatprep.subr.mxu0 0.0
    %1286 = vmatpush1.msra.mxu0 0.0
    %1287 = vmatprep.subr.mxu0 0.0
    %1288 = vmatpush1.msra.mxu0 0.0
    %1289 = vmatprep.subr.mxu0 0.0
    %1290 = vmatpush1.msra.mxu0 0.0
    %1291 = vmatprep.subr.mxu0 0.0
    %1292 = vmatpush1.msra.mxu0 0.0
    %1293 = vmatprep.subr.mxu0 0.0
    %1294 = vmatpush1.msra.mxu0 0.0
    %1295 = vmatprep.mubr.f32.mxu0 0.0
    %1296 = vmatmul.mubr.f32.gmra.mrb[0].mxu0 %v1199
    %v1297 = vpop.f32.mrb[0].mxu0
    %v1298 = vadd.f32 0.0, %v1297
    %v1299 = vpop.f32.mrb[0].mxu0
    %1300 = vmatprep.mubr.f32.mxu0 0.0
    %1301 = vmatmul.mubr.f32.gmra.mrb[0].mxu0 %v1200
    %v1302 = vpop.f32.mrb[0].mxu0
    %v1303 = vadd.f32 0.0, %v1302
    %v1304 = vpop.f32.mrb[0].mxu0
    %1305 = vmatprep.mubr.f32.mxu0 0.0
    %1306 = vmatmul.mubr.f32.gmra.mrb[0].mxu0 %v1201
    %v1307 = vpop.f32.mrb[0].mxu0
    %v1308 = vadd.f32 0.0, %v1307
    %v1309 = vpop.f32.mrb[0].mxu0
    %1310 = vmatprep.mubr.f32.mxu0 0.0
    %1311 = vmatmul.mubr.f32.gmra.mrb[0].mxu0 %v1202
    %v1312 = vpop.f32.mrb[0].mxu0
    %v1313 = vadd.f32 0.0, %v1312
    %v1314 = vpop.f32.mrb[0].mxu0
    %1315 = vmatprep.mubr.f32.mxu0 0.0
    %1316 = vmatmul.mubr.f32.gmra.mrb[0].mxu0 %v1203
    %v1317 = vpop.f32.mrb[0].mxu0
    %v1318 = vadd.f32 0.0, %v1317
    %v1319 = vpop.f32.mrb[0].mxu0
    %1320 = vmatprep.mubr.f32.mxu0 0.0
    %1321 = vmatmul.mubr.f32.gmra.mrb[0].mxu0 %v1204
    %v1322 = vpop.f32.mrb[0].mxu0
    %v1323 = vadd.f32 0.0, %v1322
    %v1324 = vpop.f32.mrb[0].mxu0
    %1325 = vmatprep.mubr.f32.mxu0 0.0
    %1326 = vmatmul.mubr.f32.gmra.mrb[0].mxu0 %v1205
    %v1327 = vpop.f32.mrb[0].mxu0
    %v1328 = vadd.f32 0.0, %v1327
    %v1329 = vpop.f32.mrb[0].mxu0
    %1330 = vmatprep.mubr.f32.mxu0 0.0
    %1331 = vmatmul.mubr.f32.gmra.mrb[0].mxu0 %v1206
    %v1332 = vpop.f32.mrb[0].mxu0
    %v1333 = vadd.f32 0.0, %v1332
    %v1334 = vpop.f32.mrb[0].mxu0
    %1335 = vmatprep.mubr.f32.mxu0 0.0
    %1336 = vmatmul.mubr.f32.gmra.mrb[0].mxu0 %v1207
    %v1337 = vpop.f32.mrb[0].mxu0
    %v1338 = vadd.f32 0.0, %v1337
    %v1339 = vpop.f32.mrb[0].mxu0
    %1340 = vmatprep.mubr.f32.mxu0 0.0
    %1341 = vmatmul.mubr.f32.gmra.mrb[0].mxu0 %v1208
    %v1342 = vpop.f32.mrb[0].mxu0
    %v1343 = vadd.f32 0.0, %v1342
    %v1344 = vpop.f32.mrb[0].mxu0
    %1345 = vmatprep.mubr.f32.mxu0 0.0
    %1346 = vmatmul.mubr.f32.gmra.mrb[0].mxu0 %v1209
    %v1347 = vpop.f32.mrb[0].mxu0
    %v1348 = vadd.f32 0.0, %v1347
    %v1349 = vpop.f32.mrb[0].mxu0
    %1350 = vmatprep.mubr.f32.mxu0 0.0
    %1351 = vmatmul.mubr.f32.gmra.mrb[0].mxu0 %v1210
    %v1352 = vpop.f32.mrb[0].mxu0
    %v1353 = vadd.f32 0.0, %v1352
    %v1354 = vpop.f32.mrb[0].mxu0
    %1355 = vmatprep.mubr.f32.mxu0 0.0
    %1356 = vmatmul.mubr.f32.gmra.mrb[0].mxu0 %v1211
    %v1357 = vpop.f32.mrb[0].mxu0
    %v1358 = vadd.f32 0.0, %v1357
    %v1359 = vpop.f32.mrb[0].mxu0
    %1360 = vmatprep.mubr.f32.mxu0 0.0
    %1361 = vmatmul.mubr.f32.gmra.mrb[0].mxu0 %v1212
    %v1362 = vpop.f32.mrb[0].mxu0
    %v1363 = vadd.f32 0.0, %v1362
    %v1364 = vpop.f32.mrb[0].mxu0
    %1365 = vmatprep.mubr.f32.mxu0 0.0
    %1366 = vmatmul.mubr.f32.gmra.mrb[0].mxu0 %v1213
    %v1367 = vpop.f32.mrb[0].mxu0
    %v1368 = vadd.f32 0.0, %v1367
    %v1369 = vpop.f32.mrb[0].mxu0
    %1370 = vmatprep.mubr.f32.mxu0 0.0
    %1371 = vmatmul.mubr.f32.gmra.mrb[0].mxu0 %v1214
    %v1372 = vpop.f32.mrb[0].mxu0
    %v1373 = vadd.f32 0.0, %v1372
    %v1374 = vpop.f32.mrb[0].mxu0
    %1375 = vdwg.mxu0
    %1376 = vst [vmem:[#allocation3] sm:$0xff] %v1298
    %1377 = vst [vmem:[#allocation3 + $0x8] sm:$0xff] %v1303
    %1378 = vst [vmem:[#allocation3 + $0x10] sm:$0xff] %v1308
    %1379 = vst [vmem:[#allocation3 + $0x18] sm:$0xff] %v1313
    %1380 = vst [vmem:[#allocation3 + $0x20] sm:$0xff] %v1318
    %1381 = vst [vmem:[#allocation3 + $0x28] sm:$0xff] %v1323
    %1382 = vst [vmem:[#allocation3 + $0x30] sm:$0xff] %v1328
    %1383 = vst [vmem:[#allocation3 + $0x38] sm:$0xff] %v1333
    %1384 = vst [vmem:[#allocation3 + $0x40] sm:$0xff] %v1338
    %1385 = vst [vmem:[#allocation3 + $0x48] sm:$0xff] %v1343
    %1386 = vst [vmem:[#allocation3 + $0x50] sm:$0xff] %v1348
    %1387 = vst [vmem:[#allocation3 + $0x58] sm:$0xff] %v1353
    %1388 = vst [vmem:[#allocation3 + $0x60] sm:$0xff] %v1358
    %1389 = vst [vmem:[#allocation3 + $0x68] sm:$0xff] %v1363
    %1390 = vst [vmem:[#allocation3 + $0x70] sm:$0xff] %v1368
    %1391 = vst [vmem:[#allocation3 + $0x78] sm:$0xff] %v1373
    %v1392 = vld [vmem:[#allocation2] sm:$0xff]
    %v1393 = vld [vmem:[#allocation2 + $0x8] sm:$0xff]
    %v1394 = vld [vmem:[#allocation2 + $0x10] sm:$0xff]
    %v1395 = vld [vmem:[#allocation2 + $0x18] sm:$0xff]
    %v1396 = vld [vmem:[#allocation2 + $0x20] sm:$0xff]
    %v1397 = vld [vmem:[#allocation2 + $0x28] sm:$0xff]
    %v1398 = vld [vmem:[#allocation2 + $0x30] sm:$0xff]
    %v1399 = vld [vmem:[#allocation2 + $0x38] sm:$0xff]
    %v1400 = vld [vmem:[#allocation2 + $0x40] sm:$0xff]
    %v1401 = vld [vmem:[#allocation2 + $0x48] sm:$0xff]
    %v1402 = vld [vmem:[#allocation2 + $0x50] sm:$0xff]
    %v1403 = vld [vmem:[#allocation2 + $0x58] sm:$0xff]
    %v1404 = vld [vmem:[#allocation2 + $0x60] sm:$0xff]
    %v1405 = vld [vmem:[#allocation2 + $0x68] sm:$0xff]
    %v1406 = vld [vmem:[#allocation2 + $0x70] sm:$0xff]
    %v1407 = vld [vmem:[#allocation2 + $0x78] sm:$0xff]
    %1408 = vmatprep.subr.mxu0 0.0
    %1409 = vmatpush1.msra.mxu0 %v1392
    %1410 = vmatprep.subr.mxu0 0.0
    %1411 = vmatpush1.msra.mxu0 %v1393
    %1412 = vmatprep.subr.mxu0 0.0
    %1413 = vmatpush1.msra.mxu0 %v1394
    %1414 = vmatprep.subr.mxu0 0.0
    %1415 = vmatpush1.msra.mxu0 %v1395
    %1416 = vmatprep.subr.mxu0 0.0
    %1417 = vmatpush1.msra.mxu0 %v1396
    %1418 = vmatprep.subr.mxu0 0.0
    %1419 = vmatpush1.msra.mxu0 %v1397
    %1420 = vmatprep.subr.mxu0 0.0
    %1421 = vmatpush1.msra.mxu0 %v1398
    %1422 = vmatprep.subr.mxu0 0.0
    %1423 = vmatpush1.msra.mxu0 %v1399
    %1424 = vmatprep.subr.mxu0 0.0
    %1425 = vmatpush1.msra.mxu0 %v1400
    %1426 = vmatprep.subr.mxu0 0.0
    %1427 = vmatpush1.msra.mxu0 %v1401
    %1428 = vmatprep.subr.mxu0 0.0
    %1429 = vmatpush1.msra.mxu0 %v1402
    %1430 = vmatprep.subr.mxu0 0.0
    %1431 = vmatpush1.msra.mxu0 %v1403
    %1432 = vmatprep.subr.mxu0 0.0
    %1433 = vmatpush1.msra.mxu0 %v1404
    %1434 = vmatprep.subr.mxu0 0.0
    %1435 = vmatpush1.msra.mxu0 %v1405
    %1436 = vmatprep.subr.mxu0 0.0
    %1437 = vmatpush1.msra.mxu0 %v1406
    %1438 = vmatprep.subr.mxu0 0.0
    %1439 = vmatpush1.msra.mxu0 %v1407
    %1440 = vmatprep.subr.mxu0 0.0
    %1441 = vmatpush1.msra.mxu0 0.0
    %1442 = vmatprep.subr.mxu0 0.0
    %1443 = vmatpush1.msra.mxu0 0.0
    %1444 = vmatprep.subr.mxu0 0.0
    %1445 = vmatpush1.msra.mxu0 0.0
    %1446 = vmatprep.subr.mxu0 0.0
    %1447 = vmatpush1.msra.mxu0 0.0
    %1448 = vmatprep.subr.mxu0 0.0
    %1449 = vmatpush1.msra.mxu0 0.0
    %1450 = vmatprep.subr.mxu0 0.0
    %1451 = vmatpush1.msra.mxu0 0.0
    %1452 = vmatprep.subr.mxu0 0.0
    %1453 = vmatpush1.msra.mxu0 0.0
    %1454 = vmatprep.subr.mxu0 0.0
    %1455 = vmatpush1.msra.mxu0 0.0
    %1456 = vmatprep.subr.mxu0 0.0
    %1457 = vmatpush1.msra.mxu0 0.0
    %1458 = vmatprep.subr.mxu0 0.0
    %1459 = vmatpush1.msra.mxu0 0.0
    %1460 = vmatprep.subr.mxu0 0.0
    %1461 = vmatpush1.msra.mxu0 0.0
    %1462 = vmatprep.subr.mxu0 0.0
    %1463 = vmatpush1.msra.mxu0 0.0
    %1464 = vmatprep.subr.mxu0 0.0
    %1465 = vmatpush1.msra.mxu0 0.0
    %1466 = vmatprep.subr.mxu0 0.0
    %1467 = vmatpush1.msra.mxu0 0.0
    %1468 = vmatprep.subr.mxu0 0.0
    %1469 = vmatpush1.msra.mxu0 0.0
    %1470 = vmatprep.subr.mxu0 0.0
    %1471 = vmatpush1.msra.mxu0 0.0
    %1472 = vmatprep.mubr.f32.mxu0 0.0
    %1473 = vmatmul.mubr.f32.gmra.mrb[0].mxu0 %v1199
    %v1474 = vpop.f32.mrb[0].mxu0
    %v1475 = vadd.f32 0.0, %v1474
    %v1476 = vpop.f32.mrb[0].mxu0
    %1477 = vmatprep.mubr.f32.mxu0 0.0
    %1478 = vmatmul.mubr.f32.gmra.mrb[0].mxu0 %v1200
    %v1479 = vpop.f32.mrb[0].mxu0
    %v1480 = vadd.f32 0.0, %v1479
    %v1481 = vpop.f32.mrb[0].mxu0
    %1482 = vmatprep.mubr.f32.mxu0 0.0
    %1483 = vmatmul.mubr.f32.gmra.mrb[0].mxu0 %v1201
    %v1484 = vpop.f32.mrb[0].mxu0
    %v1485 = vadd.f32 0.0, %v1484
    %v1486 = vpop.f32.mrb[0].mxu0
    %1487 = vmatprep.mubr.f32.mxu0 0.0
    %1488 = vmatmul.mubr.f32.gmra.mrb[0].mxu0 %v1202
    %v1489 = vpop.f32.mrb[0].mxu0
    %v1490 = vadd.f32 0.0, %v1489
    %v1491 = vpop.f32.mrb[0].mxu0
    %1492 = vmatprep.mubr.f32.mxu0 0.0
    %1493 = vmatmul.mubr.f32.gmra.mrb[0].mxu0 %v1203
    %v1494 = vpop.f32.mrb[0].mxu0
    %v1495 = vadd.f32 0.0, %v1494
    %v1496 = vpop.f32.mrb[0].mxu0
    %1497 = vmatprep.mubr.f32.mxu0 0.0
    %1498 = vmatmul.mubr.f32.gmra.mrb[0].mxu0 %v1204
    %v1499 = vpop.f32.mrb[0].mxu0
    %v1500 = vadd.f32 0.0, %v1499
    %v1501 = vpop.f32.mrb[0].mxu0
    %1502 = vmatprep.mubr.f32.mxu0 0.0
    %1503 = vmatmul.mubr.f32.gmra.mrb[0].mxu0 %v1205
    %v1504 = vpop.f32.mrb[0].mxu0
    %v1505 = vadd.f32 0.0, %v1504
    %v1506 = vpop.f32.mrb[0].mxu0
    %1507 = vmatprep.mubr.f32.mxu0 0.0
    %1508 = vmatmul.mubr.f32.gmra.mrb[0].mxu0 %v1206
    %v1509 = vpop.f32.mrb[0].mxu0
    %v1510 = vadd.f32 0.0, %v1509
    %v1511 = vpop.f32.mrb[0].mxu0
    %1512 = vmatprep.mubr.f32.mxu0 0.0
    %1513 = vmatmul.mubr.f32.gmra.mrb[0].mxu0 %v1207
    %v1514 = vpop.f32.mrb[0].mxu0
    %v1515 = vadd.f32 0.0, %v1514
    %v1516 = vpop.f32.mrb[0].mxu0
    %1517 = vmatprep.mubr.f32.mxu0 0.0
    %1518 = vmatmul.mubr.f32.gmra.mrb[0].mxu0 %v1208
    %v1519 = vpop.f32.mrb[0].mxu0
    %v1520 = vadd.f32 0.0, %v1519
    %v1521 = vpop.f32.mrb[0].mxu0
    %1522 = vmatprep.mubr.f32.mxu0 0.0
    %1523 = vmatmul.mubr.f32.gmra.mrb[0].mxu0 %v1209
    %v1524 = vpop.f32.mrb[0].mxu0
    %v1525 = vadd.f32 0.0, %v1524
    %v1526 = vpop.f32.mrb[0].mxu0
    %1527 = vmatprep.mubr.f32.mxu0 0.0
    %1528 = vmatmul.mubr.f32.gmra.mrb[0].mxu0 %v1210
    %v1529 = vpop.f32.mrb[0].mxu0
    %v1530 = vadd.f32 0.0, %v1529
    %v1531 = vpop.f32.mrb[0].mxu0
    %1532 = vmatprep.mubr.f32.mxu0 0.0
    %1533 = vmatmul.mubr.f32.gmra.mrb[0].mxu0 %v1211
    %v1534 = vpop.f32.mrb[0].mxu0
    %v1535 = vadd.f32 0.0, %v1534
    %v1536 = vpop.f32.mrb[0].mxu0
    %1537 = vmatprep.mubr.f32.mxu0 0.0
    %1538 = vmatmul.mubr.f32.gmra.mrb[0].mxu0 %v1212
    %v1539 = vpop.f32.mrb[0].mxu0
    %v1540 = vadd.f32 0.0, %v1539
    %v1541 = vpop.f32.mrb[0].mxu0
    %1542 = vmatprep.mubr.f32.mxu0 0.0
    %1543 = vmatmul.mubr.f32.gmra.mrb[0].mxu0 %v1213
    %v1544 = vpop.f32.mrb[0].mxu0
    %v1545 = vadd.f32 0.0, %v1544
    %v1546 = vpop.f32.mrb[0].mxu0
    %1547 = vmatprep.mubr.f32.mxu0 0.0
    %1548 = vmatmul.mubr.f32.gmra.mrb[0].mxu0 %v1214
    %v1549 = vpop.f32.mrb[0].mxu0
    %v1550 = vadd.f32 0.0, %v1549
    %v1551 = vpop.f32.mrb[0].mxu0
    %1552 = vdwg.mxu0
    %1553 = vmatprep.subr.mxu0 0.0
    %1554 = vmatpush1.xpose.msra.mxu0 %v1199
    %1555 = vmatprep.subr.mxu0 0.0
    %1556 = vmatpush1.xpose.msra.mxu0 %v1200
    %1557 = vmatprep.subr.mxu0 0.0
    %1558 = vmatpush1.xpose.msra.mxu0 %v1201
    %1559 = vmatprep.subr.mxu0 0.0
    %1560 = vmatpush1.xpose.msra.mxu0 %v1202
    %1561 = vmatprep.subr.mxu0 0.0
    %1562 = vmatpush1.xpose.msra.mxu0 %v1203
    %1563 = vmatprep.subr.mxu0 0.0
    %1564 = vmatpush1.xpose.msra.mxu0 %v1204
    %1565 = vmatprep.subr.mxu0 0.0
    %1566 = vmatpush1.xpose.msra.mxu0 %v1205
    %1567 = vmatprep.subr.mxu0 0.0
    %1568 = vmatpush1.xpose.msra.mxu0 %v1206
    %1569 = vmatprep.subr.mxu0 0.0
    %1570 = vmatpush1.xpose.msra.mxu0 %v1207
    %1571 = vmatprep.subr.mxu0 0.0
    %1572 = vmatpush1.xpose.msra.mxu0 %v1208
    %1573 = vmatprep.subr.mxu0 0.0
    %1574 = vmatpush1.xpose.msra.mxu0 %v1209
    %1575 = vmatprep.subr.mxu0 0.0
    %1576 = vmatpush1.xpose.msra.mxu0 %v1210
    %1577 = vmatprep.subr.mxu0 0.0
    %1578 = vmatpush1.xpose.msra.mxu0 %v1211
    %1579 = vmatprep.subr.mxu0 0.0
    %1580 = vmatpush1.xpose.msra.mxu0 %v1212
    %1581 = vmatprep.subr.mxu0 0.0
    %1582 = vmatpush1.xpose.msra.mxu0 %v1213
    %1583 = vmatprep.subr.mxu0 0.0
    %1584 = vmatpush1.xpose.msra.mxu0 %v1214
    %1585 = vmatprep.subr.mxu0 0.0
    %1586 = vmatpush1.xpose.msra.mxu0 0.0
    %1587 = vmatprep.subr.mxu0 0.0
    %1588 = vmatpush1.xpose.msra.mxu0 0.0
    %1589 = vmatprep.subr.mxu0 0.0
    %1590 = vmatpush1.xpose.msra.mxu0 0.0
    %1591 = vmatprep.subr.mxu0 0.0
    %1592 = vmatpush1.xpose.msra.mxu0 0.0
    %1593 = vmatprep.subr.mxu0 0.0
    %1594 = vmatpush1.xpose.msra.mxu0 0.0
    %1595 = vmatprep.subr.mxu0 0.0
    %1596 = vmatpush1.xpose.msra.mxu0 0.0
    %1597 = vmatprep.subr.mxu0 0.0
    %1598 = vmatpush1.xpose.msra.mxu0 0.0
    %1599 = vmatprep.subr.mxu0 0.0
    %1600 = vmatpush1.xpose.msra.mxu0 0.0
    %1601 = vmatprep.subr.mxu0 0.0
    %1602 = vmatpush1.xpose.msra.mxu0 0.0
    %1603 = vmatprep.subr.mxu0 0.0
    %1604 = vmatpush1.xpose.msra.mxu0 0.0
    %1605 = vmatprep.subr.mxu0 0.0
    %1606 = vmatpush1.xpose.msra.mxu0 0.0
    %1607 = vmatprep.subr.mxu0 0.0
    %1608 = vmatpush1.xpose.msra.mxu0 0.0
    %1609 = vmatprep.subr.mxu0 0.0
    %1610 = vmatpush1.xpose.msra.mxu0 0.0
    %1611 = vmatprep.subr.mxu0 0.0
    %1612 = vmatpush1.xpose.msra.mxu0 0.0
    %1613 = vmatprep.subr.mxu0 0.0
    %1614 = vmatpush1.xpose.msra.mxu0 0.0
    %1615 = vmatprep.subr.mxu0 0.0
    %1616 = vmatpush1.xpose.msra.mxu0 0.0
    %1617 = vmatprep.mubr.f32.mxu0 0.0
    %1618 = vmatmul.mubr.f32.gmra.mrb[0].mxu0 %v1475
    %v1619 = vpop.f32.mrb[0].mxu0
    %v1620 = vadd.f32 0.0, %v1619
    %v1621 = vpop.f32.mrb[0].mxu0
    %1622 = vmatprep.mubr.f32.mxu0 0.0
    %1623 = vmatmul.mubr.f32.gmra.mrb[0].mxu0 %v1480
    %v1624 = vpop.f32.mrb[0].mxu0
    %v1625 = vadd.f32 0.0, %v1624
    %v1626 = vpop.f32.mrb[0].mxu0
    %1627 = vmatprep.mubr.f32.mxu0 0.0
    %1628 = vmatmul.mubr.f32.gmra.mrb[0].mxu0 %v1485
    %v1629 = vpop.f32.mrb[0].mxu0
    %v1630 = vadd.f32 0.0, %v1629
    %v1631 = vpop.f32.mrb[0].mxu0
    %1632 = vmatprep.mubr.f32.mxu0 0.0
    %1633 = vmatmul.mubr.f32.gmra.mrb[0].mxu0 %v1490
    %v1634 = vpop.f32.mrb[0].mxu0
    %v1635 = vadd.f32 0.0, %v1634
    %v1636 = vpop.f32.mrb[0].mxu0
    %1637 = vmatprep.mubr.f32.mxu0 0.0
    %1638 = vmatmul.mubr.f32.gmra.mrb[0].mxu0 %v1495
    %v1639 = vpop.f32.mrb[0].mxu0
    %v1640 = vadd.f32 0.0, %v1639
    %v1641 = vpop.f32.mrb[0].mxu0
    %1642 = vmatprep.mubr.f32.mxu0 0.0
    %1643 = vmatmul.mubr.f32.gmra.mrb[0].mxu0 %v1500
    %v1644 = vpop.f32.mrb[0].mxu0
    %v1645 = vadd.f32 0.0, %v1644
    %v1646 = vpop.f32.mrb[0].mxu0
    %1647 = vmatprep.mubr.f32.mxu0 0.0
    %1648 = vmatmul.mubr.f32.gmra.mrb[0].mxu0 %v1505
    %v1649 = vpop.f32.mrb[0].mxu0
    %v1650 = vadd.f32 0.0, %v1649
    %v1651 = vpop.f32.mrb[0].mxu0
    %1652 = vmatprep.mubr.f32.mxu0 0.0
    %1653 = vmatmul.mubr.f32.gmra.mrb[0].mxu0 %v1510
    %v1654 = vpop.f32.mrb[0].mxu0
    %v1655 = vadd.f32 0.0, %v1654
    %v1656 = vpop.f32.mrb[0].mxu0
    %1657 = vmatprep.mubr.f32.mxu0 0.0
    %1658 = vmatmul.mubr.f32.gmra.mrb[0].mxu0 %v1515
    %v1659 = vpop.f32.mrb[0].mxu0
    %v1660 = vadd.f32 0.0, %v1659
    %v1661 = vpop.f32.mrb[0].mxu0
    %1662 = vmatprep.mubr.f32.mxu0 0.0
    %1663 = vmatmul.mubr.f32.gmra.mrb[0].mxu0 %v1520
    %v1664 = vpop.f32.mrb[0].mxu0
    %v1665 = vadd.f32 0.0, %v1664
    %v1666 = vpop.f32.mrb[0].mxu0
    %1667 = vmatprep.mubr.f32.mxu0 0.0
    %1668 = vmatmul.mubr.f32.gmra.mrb[0].mxu0 %v1525
    %v1669 = vpop.f32.mrb[0].mxu0
    %v1670 = vadd.f32 0.0, %v1669
    %v1671 = vpop.f32.mrb[0].mxu0
    %1672 = vmatprep.mubr.f32.mxu0 0.0
    %1673 = vmatmul.mubr.f32.gmra.mrb[0].mxu0 %v1530
    %v1674 = vpop.f32.mrb[0].mxu0
    %v1675 = vadd.f32 0.0, %v1674
    %v1676 = vpop.f32.mrb[0].mxu0
    %1677 = vmatprep.mubr.f32.mxu0 0.0
    %1678 = vmatmul.mubr.f32.gmra.mrb[0].mxu0 %v1535
    %v1679 = vpop.f32.mrb[0].mxu0
    %v1680 = vadd.f32 0.0, %v1679
    %v1681 = vpop.f32.mrb[0].mxu0
    %1682 = vmatprep.mubr.f32.mxu0 0.0
    %1683 = vmatmul.mubr.f32.gmra.mrb[0].mxu0 %v1540
    %v1684 = vpop.f32.mrb[0].mxu0
    %v1685 = vadd.f32 0.0, %v1684
    %v1686 = vpop.f32.mrb[0].mxu0
    %1687 = vmatprep.mubr.f32.mxu0 0.0
    %1688 = vmatmul.mubr.f32.gmra.mrb[0].mxu0 %v1545
    %v1689 = vpop.f32.mrb[0].mxu0
    %v1690 = vadd.f32 0.0, %v1689
    %v1691 = vpop.f32.mrb[0].mxu0
    %1692 = vmatprep.mubr.f32.mxu0 0.0
    %1693 = vmatmul.mubr.f32.gmra.mrb[0].mxu0 %v1550
    %v1694 = vpop.f32.mrb[0].mxu0
    %v1695 = vadd.f32 0.0, %v1694
    %v1696 = vpop.f32.mrb[0].mxu0
    %1697 = vdwg.mxu0
    %1698 = vst [vmem:[#allocation2] sm:$0xff] %v1620
    %1699 = vst [vmem:[#allocation2 + $0x8] sm:$0xff] %v1625
    %1700 = vst [vmem:[#allocation2 + $0x10] sm:$0xff] %v1630
    %1701 = vst [vmem:[#allocation2 + $0x18] sm:$0xff] %v1635
    %1702 = vst [vmem:[#allocation2 + $0x20] sm:$0xff] %v1640
    %1703 = vst [vmem:[#allocation2 + $0x28] sm:$0xff] %v1645
    %1704 = vst [vmem:[#allocation2 + $0x30] sm:$0xff] %v1650
    %1705 = vst [vmem:[#allocation2 + $0x38] sm:$0xff] %v1655
    %1706 = vst [vmem:[#allocation2 + $0x40] sm:$0xff] %v1660
    %1707 = vst [vmem:[#allocation2 + $0x48] sm:$0xff] %v1665
    %1708 = vst [vmem:[#allocation2 + $0x50] sm:$0xff] %v1670
    %1709 = vst [vmem:[#allocation2 + $0x58] sm:$0xff] %v1675
    %1710 = vst [vmem:[#allocation2 + $0x60] sm:$0xff] %v1680
    %1711 = vst [vmem:[#allocation2 + $0x68] sm:$0xff] %v1685
    %1712 = vst [vmem:[#allocation2 + $0x70] sm:$0xff] %v1690
    %1713 = vst [vmem:[#allocation2 + $0x78] sm:$0xff] %v1695
    %s1714 = smul.u32 %s1197, 2
    %s1715 = sld [smem:[#allocation5 + %s1714]]
    %s1716 = scalar_lea.vmem [#allocation2], %s1715
    %v1717 = vld [vmem:[%s1716] sm:$0x1]
    %s1718 = scalar_lea.vmem [#allocation12], 16
    %1719 = vst [vmem:[%s1718] sm:$0x1] %v1717
    %s1720 = sadd.s32 %s1714, 1
    %s1721 = sld [smem:[#allocation5 + %s1720]]
    %s1722 = scalar_lea.vmem [#allocation2], %s1721
    %v1723 = vld [vmem:[%s1722] sm:$0x1]
    %1724 = vst [vmem:[%s1718 + $0x1] sm:$0x1] %v1723
    // Predicated region
    $region34: #{tpu_custom_call.1} parent=1 // pred_check
      %p1725 = pneg %p68
    $region35: #{tpu_custom_call.1} parent=1 // pred_check_branch
      %1727 = sbr.rel (%p1725) target = $region37
    $region36: #{tpu_custom_call.1} parent=1 // pred_region
      %v1728 = vld [vmem:[#allocation2] sm:$0xff]
      %v1729 = vld [vmem:[#allocation2 + $0x8] sm:$0xff]
      %v1730 = vld [vmem:[#allocation2 + $0x10] sm:$0xff]
      %v1731 = vld [vmem:[#allocation2 + $0x18] sm:$0xff]
      %v1732 = vld [vmem:[#allocation2 + $0x20] sm:$0xff]
      %v1733 = vld [vmem:[#allocation2 + $0x28] sm:$0xff]
      %v1734 = vld [vmem:[#allocation2 + $0x30] sm:$0xff]
      %v1735 = vld [vmem:[#allocation2 + $0x38] sm:$0xff]
      %v1736 = vld [vmem:[#allocation2 + $0x40] sm:$0xff]
      %v1737 = vld [vmem:[#allocation2 + $0x48] sm:$0xff]
      %v1738 = vld [vmem:[#allocation2 + $0x50] sm:$0xff]
      %v1739 = vld [vmem:[#allocation2 + $0x58] sm:$0xff]
      %v1740 = vld [vmem:[#allocation2 + $0x60] sm:$0xff]
      %v1741 = vld [vmem:[#allocation2 + $0x68] sm:$0xff]
      %v1742 = vld [vmem:[#allocation2 + $0x70] sm:$0xff]
      %v1743 = vld [vmem:[#allocation2 + $0x78] sm:$0xff]
      %v1744 = vld [vmem:[#allocation3] sm:$0xff]
      %v1745 = vld [vmem:[#allocation3 + $0x8] sm:$0xff]
      %v1746 = vld [vmem:[#allocation3 + $0x10] sm:$0xff]
      %v1747 = vld [vmem:[#allocation3 + $0x18] sm:$0xff]
      %v1748 = vld [vmem:[#allocation3 + $0x20] sm:$0xff]
      %v1749 = vld [vmem:[#allocation3 + $0x28] sm:$0xff]
      %v1750 = vld [vmem:[#allocation3 + $0x30] sm:$0xff]
      %v1751 = vld [vmem:[#allocation3 + $0x38] sm:$0xff]
      %v1752 = vld [vmem:[#allocation3 + $0x40] sm:$0xff]
      %v1753 = vld [vmem:[#allocation3 + $0x48] sm:$0xff]
      %v1754 = vld [vmem:[#allocation3 + $0x50] sm:$0xff]
      %v1755 = vld [vmem:[#allocation3 + $0x58] sm:$0xff]
      %v1756 = vld [vmem:[#allocation3 + $0x60] sm:$0xff]
      %v1757 = vld [vmem:[#allocation3 + $0x68] sm:$0xff]
      %v1758 = vld [vmem:[#allocation3 + $0x70] sm:$0xff]
      %v1759 = vld [vmem:[#allocation3 + $0x78] sm:$0xff]
      %1760 = vst [vmem:[#allocation13] sm:$0xff] %v1728
      %1761 = vst [vmem:[#allocation13 + $0x8] sm:$0xff] %v1729
      %1762 = vst [vmem:[#allocation13 + $0x10] sm:$0xff] %v1730
      %1763 = vst [vmem:[#allocation13 + $0x18] sm:$0xff] %v1731
      %1764 = vst [vmem:[#allocation13 + $0x20] sm:$0xff] %v1732
      %1765 = vst [vmem:[#allocation13 + $0x28] sm:$0xff] %v1733
      %1766 = vst [vmem:[#allocation13 + $0x30] sm:$0xff] %v1734
      %1767 = vst [vmem:[#allocation13 + $0x38] sm:$0xff] %v1735
      %1768 = vst [vmem:[#allocation13 + $0x40] sm:$0xff] %v1736
      %1769 = vst [vmem:[#allocation13 + $0x48] sm:$0xff] %v1737
      %1770 = vst [vmem:[#allocation13 + $0x50] sm:$0xff] %v1738
      %1771 = vst [vmem:[#allocation13 + $0x58] sm:$0xff] %v1739
      %1772 = vst [vmem:[#allocation13 + $0x60] sm:$0xff] %v1740
      %1773 = vst [vmem:[#allocation13 + $0x68] sm:$0xff] %v1741
      %1774 = vst [vmem:[#allocation13 + $0x70] sm:$0xff] %v1742
      %1775 = vst [vmem:[#allocation13 + $0x78] sm:$0xff] %v1743
      %1776 = vst [vmem:[#allocation15] sm:$0xff] %v1744
      %1777 = vst [vmem:[#allocation15 + $0x8] sm:$0xff] %v1745
      %1778 = vst [vmem:[#allocation15 + $0x10] sm:$0xff] %v1746
      %1779 = vst [vmem:[#allocation15 + $0x18] sm:$0xff] %v1747
      %1780 = vst [vmem:[#allocation15 + $0x20] sm:$0xff] %v1748
      %1781 = vst [vmem:[#allocation15 + $0x28] sm:$0xff] %v1749
      %1782 = vst [vmem:[#allocation15 + $0x30] sm:$0xff] %v1750
      %1783 = vst [vmem:[#allocation15 + $0x38] sm:$0xff] %v1751
      %1784 = vst [vmem:[#allocation15 + $0x40] sm:$0xff] %v1752
      %1785 = vst [vmem:[#allocation15 + $0x48] sm:$0xff] %v1753
      %1786 = vst [vmem:[#allocation15 + $0x50] sm:$0xff] %v1754
      %1787 = vst [vmem:[#allocation15 + $0x58] sm:$0xff] %v1755
      %1788 = vst [vmem:[#allocation15 + $0x60] sm:$0xff] %v1756
      %1789 = vst [vmem:[#allocation15 + $0x68] sm:$0xff] %v1757
      %1790 = vst [vmem:[#allocation15 + $0x70] sm:$0xff] %v1758
      %1791 = vst [vmem:[#allocation15 + $0x78] sm:$0xff] %v1759
      %v1792 = vld [vmem:[#allocation11] sm:$0xff]
      %v1793 = vld [vmem:[#allocation11 + $0x8] sm:$0xff]
      %v1794 = vld [vmem:[#allocation11 + $0x10] sm:$0xff]
      %v1795 = vld [vmem:[#allocation11 + $0x18] sm:$0xff]
      %v1796 = vld [vmem:[#allocation11 + $0x20] sm:$0xff]
      %v1797 = vld [vmem:[#allocation11 + $0x28] sm:$0xff]
      %v1798 = vld [vmem:[#allocation11 + $0x30] sm:$0xff]
      %v1799 = vld [vmem:[#allocation11 + $0x38] sm:$0xff]
      %v1800 = vld [vmem:[#allocation11 + $0x40] sm:$0xff]
      %v1801 = vld [vmem:[#allocation11 + $0x48] sm:$0xff]
      %v1802 = vld [vmem:[#allocation11 + $0x50] sm:$0xff]
      %v1803 = vld [vmem:[#allocation11 + $0x58] sm:$0xff]
      %v1804 = vld [vmem:[#allocation11 + $0x60] sm:$0xff]
      %v1805 = vld [vmem:[#allocation11 + $0x68] sm:$0xff]
      %v1806 = vld [vmem:[#allocation11 + $0x70] sm:$0xff]
      %v1807 = vld [vmem:[#allocation11 + $0x78] sm:$0xff]
      %v1808 = vmul.f32 %v1728, %v1792
      %v1809 = vmul.f32 %v1729, %v1793
      %v1810 = vmul.f32 %v1730, %v1794
      %v1811 = vmul.f32 %v1731, %v1795
      %v1812 = vmul.f32 %v1732, %v1796
      %v1813 = vmul.f32 %v1733, %v1797
      %v1814 = vmul.f32 %v1734, %v1798
      %v1815 = vmul.f32 %v1735, %v1799
      %v1816 = vmul.f32 %v1736, %v1800
      %v1817 = vmul.f32 %v1737, %v1801
      %v1818 = vmul.f32 %v1738, %v1802
      %v1819 = vmul.f32 %v1739, %v1803
      %v1820 = vmul.f32 %v1740, %v1804
      %v1821 = vmul.f32 %v1741, %v1805
      %v1822 = vmul.f32 %v1742, %v1806
      %v1823 = vmul.f32 %v1743, %v1807
      %1824 = vst [vmem:[#allocation16] sm:$0xff] %v1808
      %1825 = vst [vmem:[#allocation16 + $0x8] sm:$0xff] %v1809
      %1826 = vst [vmem:[#allocation16 + $0x10] sm:$0xff] %v1810
      %1827 = vst [vmem:[#allocation16 + $0x18] sm:$0xff] %v1811
      %1828 = vst [vmem:[#allocation16 + $0x20] sm:$0xff] %v1812
      %1829 = vst [vmem:[#allocation16 + $0x28] sm:$0xff] %v1813
      %1830 = vst [vmem:[#allocation16 + $0x30] sm:$0xff] %v1814
      %1831 = vst [vmem:[#allocation16 + $0x38] sm:$0xff] %v1815
      %1832 = vst [vmem:[#allocation16 + $0x40] sm:$0xff] %v1816
      %1833 = vst [vmem:[#allocation16 + $0x48] sm:$0xff] %v1817
      %1834 = vst [vmem:[#allocation16 + $0x50] sm:$0xff] %v1818
      %1835 = vst [vmem:[#allocation16 + $0x58] sm:$0xff] %v1819
      %1836 = vst [vmem:[#allocation16 + $0x60] sm:$0xff] %v1820
      %1837 = vst [vmem:[#allocation16 + $0x68] sm:$0xff] %v1821
      %1838 = vst [vmem:[#allocation16 + $0x70] sm:$0xff] %v1822
      %1839 = vst [vmem:[#allocation16 + $0x78] sm:$0xff] %v1823
      %1840 = vxpose.xlu0.b32.start [1/16] %v1744, 128
      %1841 = vxpose.xlu0.b32.cont [2/16] %v1745, 128
      %1842 = vxpose.xlu0.b32.cont [3/16] %v1746, 128
      %1843 = vxpose.xlu0.b32.cont [4/16] %v1747, 128
      %1844 = vxpose.xlu0.b32.cont [5/16] %v1748, 128
      %1845 = vxpose.xlu0.b32.cont [6/16] %v1749, 128
      %1846 = vxpose.xlu0.b32.cont [7/16] %v1750, 128
      %1847 = vxpose.xlu0.b32.cont [8/16] %v1751, 128
      %1848 = vxpose.xlu0.b32.cont [9/16] %v1752, 128
      %1849 = vxpose.xlu0.b32.cont [10/16] %v1753, 128
      %1850 = vxpose.xlu0.b32.cont [11/16] %v1754, 128
      %1851 = vxpose.xlu0.b32.cont [12/16] %v1755, 128
      %1852 = vxpose.xlu0.b32.cont [13/16] %v1756, 128
      %1853 = vxpose.xlu0.b32.cont [14/16] %v1757, 128
      %1854 = vxpose.xlu0.b32.cont [15/16] %v1758, 128
      %1855 = vxpose.xlu0.b32.end [16/16] %v1759, 128
      %v1856 = vpop.trf.xlu0
      %v1857 = vpop.trf.xlu0
      %v1858 = vpop.trf.xlu0
      %v1859 = vpop.trf.xlu0
      %v1860 = vpop.trf.xlu0
      %v1861 = vpop.trf.xlu0
      %v1862 = vpop.trf.xlu0
      %v1863 = vpop.trf.xlu0
      %v1864 = vpop.trf.xlu0
      %v1865 = vpop.trf.xlu0
      %v1866 = vpop.trf.xlu0
      %v1867 = vpop.trf.xlu0
      %v1868 = vpop.trf.xlu0
      %v1869 = vpop.trf.xlu0
      %v1870 = vpop.trf.xlu0
      %v1871 = vpop.trf.xlu0
      %1872 = vmatprep.subr.mxu0 0.0
      %1873 = vmatpush1.msra.mxu0 %v1808
      %1874 = vmatprep.subr.mxu0 0.0
      %1875 = vmatpush1.msra.mxu0 %v1809
      %1876 = vmatprep.subr.mxu0 0.0
      %1877 = vmatpush1.msra.mxu0 %v1810
      %1878 = vmatprep.subr.mxu0 0.0
      %1879 = vmatpush1.msra.mxu0 %v1811
      %1880 = vmatprep.subr.mxu0 0.0
      %1881 = vmatpush1.msra.mxu0 %v1812
      %1882 = vmatprep.subr.mxu0 0.0
      %1883 = vmatpush1.msra.mxu0 %v1813
      %1884 = vmatprep.subr.mxu0 0.0
      %1885 = vmatpush1.msra.mxu0 %v1814
      %1886 = vmatprep.subr.mxu0 0.0
      %1887 = vmatpush1.msra.mxu0 %v1815
      %1888 = vmatprep.subr.mxu0 0.0
      %1889 = vmatpush1.msra.mxu0 %v1816
      %1890 = vmatprep.subr.mxu0 0.0
      %1891 = vmatpush1.msra.mxu0 %v1817
      %1892 = vmatprep.subr.mxu0 0.0
      %1893 = vmatpush1.msra.mxu0 %v1818
      %1894 = vmatprep.subr.mxu0 0.0
      %1895 = vmatpush1.msra.mxu0 %v1819
      %1896 = vmatprep.subr.mxu0 0.0
      %1897 = vmatpush1.msra.mxu0 %v1820
      %1898 = vmatprep.subr.mxu0 0.0
      %1899 = vmatpush1.msra.mxu0 %v1821
      %1900 = vmatprep.subr.mxu0 0.0
      %1901 = vmatpush1.msra.mxu0 %v1822
      %1902 = vmatprep.subr.mxu0 0.0
      %1903 = vmatpush1.msra.mxu0 %v1823
      %1904 = vmatprep.subr.mxu0 0.0
      %1905 = vmatpush1.msra.mxu0 0.0
      %1906 = vmatprep.subr.mxu0 0.0
      %1907 = vmatpush1.msra.mxu0 0.0
      %1908 = vmatprep.subr.mxu0 0.0
      %1909 = vmatpush1.msra.mxu0 0.0
      %1910 = vmatprep.subr.mxu0 0.0
      %1911 = vmatpush1.msra.mxu0 0.0
      %1912 = vmatprep.subr.mxu0 0.0
      %1913 = vmatpush1.msra.mxu0 0.0
      %1914 = vmatprep.subr.mxu0 0.0
      %1915 = vmatpush1.msra.mxu0 0.0
      %1916 = vmatprep.subr.mxu0 0.0
      %1917 = vmatpush1.msra.mxu0 0.0
      %1918 = vmatprep.subr.mxu0 0.0
      %1919 = vmatpush1.msra.mxu0 0.0
      %1920 = vmatprep.subr.mxu0 0.0
      %1921 = vmatpush1.msra.mxu0 0.0
      %1922 = vmatprep.subr.mxu0 0.0
      %1923 = vmatpush1.msra.mxu0 0.0
      %1924 = vmatprep.subr.mxu0 0.0
      %1925 = vmatpush1.msra.mxu0 0.0
      %1926 = vmatprep.subr.mxu0 0.0
      %1927 = vmatpush1.msra.mxu0 0.0
      %1928 = vmatprep.subr.mxu0 0.0
      %1929 = vmatpush1.msra.mxu0 0.0
      %1930 = vmatprep.subr.mxu0 0.0
      %1931 = vmatpush1.msra.mxu0 0.0
      %1932 = vmatprep.subr.mxu0 0.0
      %1933 = vmatpush1.msra.mxu0 0.0
      %1934 = vmatprep.subr.mxu0 0.0
      %1935 = vmatpush1.msra.mxu0 0.0
      %1936 = vmatprep.mubr.f32.mxu0 0.0
      %1937 = vmatmul.mubr.f32.gmra.mrb[0].mxu0 %v1856
      %v1938 = vpop.f32.mrb[0].mxu0
      %v1939 = vadd.f32 0.0, %v1938
      %v1940 = vpop.f32.mrb[0].mxu0
      %1941 = vmatprep.mubr.f32.mxu0 0.0
      %1942 = vmatmul.mubr.f32.gmra.mrb[0].mxu0 %v1857
      %v1943 = vpop.f32.mrb[0].mxu0
      %v1944 = vadd.f32 0.0, %v1943
      %v1945 = vpop.f32.mrb[0].mxu0
      %1946 = vmatprep.mubr.f32.mxu0 0.0
      %1947 = vmatmul.mubr.f32.gmra.mrb[0].mxu0 %v1858
      %v1948 = vpop.f32.mrb[0].mxu0
      %v1949 = vadd.f32 0.0, %v1948
      %v1950 = vpop.f32.mrb[0].mxu0
      %1951 = vmatprep.mubr.f32.mxu0 0.0
      %1952 = vmatmul.mubr.f32.gmra.mrb[0].mxu0 %v1859
      %v1953 = vpop.f32.mrb[0].mxu0
      %v1954 = vadd.f32 0.0, %v1953
      %v1955 = vpop.f32.mrb[0].mxu0
      %1956 = vmatprep.mubr.f32.mxu0 0.0
      %1957 = vmatmul.mubr.f32.gmra.mrb[0].mxu0 %v1860
      %v1958 = vpop.f32.mrb[0].mxu0
      %v1959 = vadd.f32 0.0, %v1958
      %v1960 = vpop.f32.mrb[0].mxu0
      %1961 = vmatprep.mubr.f32.mxu0 0.0
      %1962 = vmatmul.mubr.f32.gmra.mrb[0].mxu0 %v1861
      %v1963 = vpop.f32.mrb[0].mxu0
      %v1964 = vadd.f32 0.0, %v1963
      %v1965 = vpop.f32.mrb[0].mxu0
      %1966 = vmatprep.mubr.f32.mxu0 0.0
      %1967 = vmatmul.mubr.f32.gmra.mrb[0].mxu0 %v1862
      %v1968 = vpop.f32.mrb[0].mxu0
      %v1969 = vadd.f32 0.0, %v1968
      %v1970 = vpop.f32.mrb[0].mxu0
      %1971 = vmatprep.mubr.f32.mxu0 0.0
      %1972 = vmatmul.mubr.f32.gmra.mrb[0].mxu0 %v1863
      %v1973 = vpop.f32.mrb[0].mxu0
      %v1974 = vadd.f32 0.0, %v1973
      %v1975 = vpop.f32.mrb[0].mxu0
      %1976 = vmatprep.mubr.f32.mxu0 0.0
      %1977 = vmatmul.mubr.f32.gmra.mrb[0].mxu0 %v1864
      %v1978 = vpop.f32.mrb[0].mxu0
      %v1979 = vadd.f32 0.0, %v1978
      %v1980 = vpop.f32.mrb[0].mxu0
      %1981 = vmatprep.mubr.f32.mxu0 0.0
      %1982 = vmatmul.mubr.f32.gmra.mrb[0].mxu0 %v1865
      %v1983 = vpop.f32.mrb[0].mxu0
      %v1984 = vadd.f32 0.0, %v1983
      %v1985 = vpop.f32.mrb[0].mxu0
      %1986 = vmatprep.mubr.f32.mxu0 0.0
      %1987 = vmatmul.mubr.f32.gmra.mrb[0].mxu0 %v1866
      %v1988 = vpop.f32.mrb[0].mxu0
      %v1989 = vadd.f32 0.0, %v1988
      %v1990 = vpop.f32.mrb[0].mxu0
      %1991 = vmatprep.mubr.f32.mxu0 0.0
      %1992 = vmatmul.mubr.f32.gmra.mrb[0].mxu0 %v1867
      %v1993 = vpop.f32.mrb[0].mxu0
      %v1994 = vadd.f32 0.0, %v1993
      %v1995 = vpop.f32.mrb[0].mxu0
      %1996 = vmatprep.mubr.f32.mxu0 0.0
      %1997 = vmatmul.mubr.f32.gmra.mrb[0].mxu0 %v1868
      %v1998 = vpop.f32.mrb[0].mxu0
      %v1999 = vadd.f32 0.0, %v1998
      %v2000 = vpop.f32.mrb[0].mxu0
      %2001 = vmatprep.mubr.f32.mxu0 0.0
      %2002 = vmatmul.mubr.f32.gmra.mrb[0].mxu0 %v1869
      %v2003 = vpop.f32.mrb[0].mxu0
      %v2004 = vadd.f32 0.0, %v2003
      %v2005 = vpop.f32.mrb[0].mxu0
      %2006 = vmatprep.mubr.f32.mxu0 0.0
      %2007 = vmatmul.mubr.f32.gmra.mrb[0].mxu0 %v1870
      %v2008 = vpop.f32.mrb[0].mxu0
      %v2009 = vadd.f32 0.0, %v2008
      %v2010 = vpop.f32.mrb[0].mxu0
      %2011 = vmatprep.mubr.f32.mxu0 0.0
      %2012 = vmatmul.mubr.f32.gmra.mrb[0].mxu0 %v1871
      %v2013 = vpop.f32.mrb[0].mxu0
      %v2014 = vadd.f32 0.0, %v2013
      %v2015 = vpop.f32.mrb[0].mxu0
      %2016 = vdwg.mxu0
      %2017 = vmatprep.subr.mxu0 0.0
      %2018 = vmatpush1.msra.mxu0 %v1744
      %2019 = vmatprep.subr.mxu0 0.0
      %2020 = vmatpush1.msra.mxu0 %v1745
      %2021 = vmatprep.subr.mxu0 0.0
      %2022 = vmatpush1.msra.mxu0 %v1746
      %2023 = vmatprep.subr.mxu0 0.0
      %2024 = vmatpush1.msra.mxu0 %v1747
      %2025 = vmatprep.subr.mxu0 0.0
      %2026 = vmatpush1.msra.mxu0 %v1748
      %2027 = vmatprep.subr.mxu0 0.0
      %2028 = vmatpush1.msra.mxu0 %v1749
      %2029 = vmatprep.subr.mxu0 0.0
      %2030 = vmatpush1.msra.mxu0 %v1750
      %2031 = vmatprep.subr.mxu0 0.0
      %2032 = vmatpush1.msra.mxu0 %v1751
      %2033 = vmatprep.subr.mxu0 0.0
      %2034 = vmatpush1.msra.mxu0 %v1752
      %2035 = vmatprep.subr.mxu0 0.0
      %2036 = vmatpush1.msra.mxu0 %v1753
      %2037 = vmatprep.subr.mxu0 0.0
      %2038 = vmatpush1.msra.mxu0 %v1754
      %2039 = vmatprep.subr.mxu0 0.0
      %2040 = vmatpush1.msra.mxu0 %v1755
      %2041 = vmatprep.subr.mxu0 0.0
      %2042 = vmatpush1.msra.mxu0 %v1756
      %2043 = vmatprep.subr.mxu0 0.0
      %2044 = vmatpush1.msra.mxu0 %v1757
      %2045 = vmatprep.subr.mxu0 0.0
      %2046 = vmatpush1.msra.mxu0 %v1758
      %2047 = vmatprep.subr.mxu0 0.0
      %2048 = vmatpush1.msra.mxu0 %v1759
      %2049 = vmatprep.subr.mxu0 0.0
      %2050 = vmatpush1.msra.mxu0 0.0
      %2051 = vmatprep.subr.mxu0 0.0
      %2052 = vmatpush1.msra.mxu0 0.0
      %2053 = vmatprep.subr.mxu0 0.0
      %2054 = vmatpush1.msra.mxu0 0.0
      %2055 = vmatprep.subr.mxu0 0.0
      %2056 = vmatpush1.msra.mxu0 0.0
      %2057 = vmatprep.subr.mxu0 0.0
      %2058 = vmatpush1.msra.mxu0 0.0
      %2059 = vmatprep.subr.mxu0 0.0
      %2060 = vmatpush1.msra.mxu0 0.0
      %2061 = vmatprep.subr.mxu0 0.0
      %2062 = vmatpush1.msra.mxu0 0.0
      %2063 = vmatprep.subr.mxu0 0.0
      %2064 = vmatpush1.msra.mxu0 0.0
      %2065 = vmatprep.subr.mxu0 0.0
      %2066 = vmatpush1.msra.mxu0 0.0
      %2067 = vmatprep.subr.mxu0 0.0
      %2068 = vmatpush1.msra.mxu0 0.0
      %2069 = vmatprep.subr.mxu0 0.0
      %2070 = vmatpush1.msra.mxu0 0.0
      %2071 = vmatprep.subr.mxu0 0.0
      %2072 = vmatpush1.msra.mxu0 0.0
      %2073 = vmatprep.subr.mxu0 0.0
      %2074 = vmatpush1.msra.mxu0 0.0
      %2075 = vmatprep.subr.mxu0 0.0
      %2076 = vmatpush1.msra.mxu0 0.0
      %2077 = vmatprep.subr.mxu0 0.0
      %2078 = vmatpush1.msra.mxu0 0.0
      %2079 = vmatprep.subr.mxu0 0.0
      %2080 = vmatpush1.msra.mxu0 0.0
      %2081 = vmatprep.mubr.f32.mxu0 0.0
      %2082 = vmatmul.mubr.f32.gmra.mrb[0].mxu0 %v1939
      %v2083 = vpop.f32.mrb[0].mxu0
      %v2084 = vadd.f32 0.0, %v2083
      %v2085 = vpop.f32.mrb[0].mxu0
      %2086 = vmatprep.mubr.f32.mxu0 0.0
      %2087 = vmatmul.mubr.f32.gmra.mrb[0].mxu0 %v1944
      %v2088 = vpop.f32.mrb[0].mxu0
      %v2089 = vadd.f32 0.0, %v2088
      %v2090 = vpop.f32.mrb[0].mxu0
      %2091 = vmatprep.mubr.f32.mxu0 0.0
      %2092 = vmatmul.mubr.f32.gmra.mrb[0].mxu0 %v1949
      %v2093 = vpop.f32.mrb[0].mxu0
      %v2094 = vadd.f32 0.0, %v2093
      %v2095 = vpop.f32.mrb[0].mxu0
      %2096 = vmatprep.mubr.f32.mxu0 0.0
      %2097 = vmatmul.mubr.f32.gmra.mrb[0].mxu0 %v1954
      %v2098 = vpop.f32.mrb[0].mxu0
      %v2099 = vadd.f32 0.0, %v2098
      %v2100 = vpop.f32.mrb[0].mxu0
      %2101 = vmatprep.mubr.f32.mxu0 0.0
      %2102 = vmatmul.mubr.f32.gmra.mrb[0].mxu0 %v1959
      %v2103 = vpop.f32.mrb[0].mxu0
      %v2104 = vadd.f32 0.0, %v2103
      %v2105 = vpop.f32.mrb[0].mxu0
      %2106 = vmatprep.mubr.f32.mxu0 0.0
      %2107 = vmatmul.mubr.f32.gmra.mrb[0].mxu0 %v1964
      %v2108 = vpop.f32.mrb[0].mxu0
      %v2109 = vadd.f32 0.0, %v2108
      %v2110 = vpop.f32.mrb[0].mxu0
      %2111 = vmatprep.mubr.f32.mxu0 0.0
      %2112 = vmatmul.mubr.f32.gmra.mrb[0].mxu0 %v1969
      %v2113 = vpop.f32.mrb[0].mxu0
      %v2114 = vadd.f32 0.0, %v2113
      %v2115 = vpop.f32.mrb[0].mxu0
      %2116 = vmatprep.mubr.f32.mxu0 0.0
      %2117 = vmatmul.mubr.f32.gmra.mrb[0].mxu0 %v1974
      %v2118 = vpop.f32.mrb[0].mxu0
      %v2119 = vadd.f32 0.0, %v2118
      %v2120 = vpop.f32.mrb[0].mxu0
      %2121 = vmatprep.mubr.f32.mxu0 0.0
      %2122 = vmatmul.mubr.f32.gmra.mrb[0].mxu0 %v1979
      %v2123 = vpop.f32.mrb[0].mxu0
      %v2124 = vadd.f32 0.0, %v2123
      %v2125 = vpop.f32.mrb[0].mxu0
      %2126 = vmatprep.mubr.f32.mxu0 0.0
      %2127 = vmatmul.mubr.f32.gmra.mrb[0].mxu0 %v1984
      %v2128 = vpop.f32.mrb[0].mxu0
      %v2129 = vadd.f32 0.0, %v2128
      %v2130 = vpop.f32.mrb[0].mxu0
      %2131 = vmatprep.mubr.f32.mxu0 0.0
      %2132 = vmatmul.mubr.f32.gmra.mrb[0].mxu0 %v1989
      %v2133 = vpop.f32.mrb[0].mxu0
      %v2134 = vadd.f32 0.0, %v2133
      %v2135 = vpop.f32.mrb[0].mxu0
      %2136 = vmatprep.mubr.f32.mxu0 0.0
      %2137 = vmatmul.mubr.f32.gmra.mrb[0].mxu0 %v1994
      %v2138 = vpop.f32.mrb[0].mxu0
      %v2139 = vadd.f32 0.0, %v2138
      %v2140 = vpop.f32.mrb[0].mxu0
      %2141 = vmatprep.mubr.f32.mxu0 0.0
      %2142 = vmatmul.mubr.f32.gmra.mrb[0].mxu0 %v1999
      %v2143 = vpop.f32.mrb[0].mxu0
      %v2144 = vadd.f32 0.0, %v2143
      %v2145 = vpop.f32.mrb[0].mxu0
      %2146 = vmatprep.mubr.f32.mxu0 0.0
      %2147 = vmatmul.mubr.f32.gmra.mrb[0].mxu0 %v2004
      %v2148 = vpop.f32.mrb[0].mxu0
      %v2149 = vadd.f32 0.0, %v2148
      %v2150 = vpop.f32.mrb[0].mxu0
      %2151 = vmatprep.mubr.f32.mxu0 0.0
      %2152 = vmatmul.mubr.f32.gmra.mrb[0].mxu0 %v2009
      %v2153 = vpop.f32.mrb[0].mxu0
      %v2154 = vadd.f32 0.0, %v2153
      %v2155 = vpop.f32.mrb[0].mxu0
      %2156 = vmatprep.mubr.f32.mxu0 0.0
      %2157 = vmatmul.mubr.f32.gmra.mrb[0].mxu0 %v2014
      %v2158 = vpop.f32.mrb[0].mxu0
      %v2159 = vadd.f32 0.0, %v2158
      %v2160 = vpop.f32.mrb[0].mxu0
      %2161 = vdwg.mxu0
      %2162 = vst [vmem:[#allocation18] sm:$0xff] %v2084
      %2163 = vst [vmem:[#allocation18 + $0x8] sm:$0xff] %v2089
      %2164 = vst [vmem:[#allocation18 + $0x10] sm:$0xff] %v2094
      %2165 = vst [vmem:[#allocation18 + $0x18] sm:$0xff] %v2099
      %2166 = vst [vmem:[#allocation18 + $0x20] sm:$0xff] %v2104
      %2167 = vst [vmem:[#allocation18 + $0x28] sm:$0xff] %v2109
      %2168 = vst [vmem:[#allocation18 + $0x30] sm:$0xff] %v2114
      %2169 = vst [vmem:[#allocation18 + $0x38] sm:$0xff] %v2119
      %2170 = vst [vmem:[#allocation18 + $0x40] sm:$0xff] %v2124
      %2171 = vst [vmem:[#allocation18 + $0x48] sm:$0xff] %v2129
      %2172 = vst [vmem:[#allocation18 + $0x50] sm:$0xff] %v2134
      %2173 = vst [vmem:[#allocation18 + $0x58] sm:$0xff] %v2139
      %2174 = vst [vmem:[#allocation18 + $0x60] sm:$0xff] %v2144
      %2175 = vst [vmem:[#allocation18 + $0x68] sm:$0xff] %v2149
      %2176 = vst [vmem:[#allocation18 + $0x70] sm:$0xff] %v2154
      %2177 = vst [vmem:[#allocation18 + $0x78] sm:$0xff] %v2159
    $region37: #{tpu_custom_call.1} parent=1 // pred_fallthru
      _
    // Predicated region
    $region38: #{tpu_custom_call.1} parent=1 // pred_check
      _
    $region39: #{tpu_custom_call.1} parent=1 // pred_check_branch
      %2179 = sbr.rel (0) target = $region41
    $region40: #{tpu_custom_call.1} parent=1 // pred_region
      %s2181 = ssub.s32 384, 384
      %2182 = vsyncadd [#allocation8], %s2181
      %s2183 = sshll.u32 [#allocation12], 4
      %s2184 = int_to_ptr.vmem [resolvable:$true] %s2183
      %2189 = dma.vmem_to_hbm [thread:$0]  %s2184, 384, %s4, [#allocation8], 128, 128, 8
    $region41: #{tpu_custom_call.1} parent=1 // pred_fallthru
      _
    // Predicated region
    $region42: #{tpu_custom_call.1} parent=1 // pred_check
      _
    $region43: #{tpu_custom_call.1} parent=1 // pred_check_branch
      %2191 = sbr.rel (0) target = $region45
    $region44: #{tpu_custom_call.1} parent=1 // pred_region
      %s2193 = ssub.s32 2048, 2048
      %2194 = vsyncadd [#allocation14], %s2193
      %s2195 = sshll.u32 [#allocation13], 4
      %s2196 = int_to_ptr.vmem [resolvable:$true] %s2195
      %2201 = dma.vmem_to_hbm [thread:$0]  %s2196, 2048, %s5, [#allocation14], 128, 128, 8
    $region45: #{tpu_custom_call.1} parent=1 // pred_fallthru
      _
    // Predicated region
    $region46: #{tpu_custom_call.1} parent=1 // pred_check
      _
    $region47: #{tpu_custom_call.1} parent=1 // pred_check_branch
      %2203 = sbr.rel (0) target = $region49
    $region48: #{tpu_custom_call.1} parent=1 // pred_region
      %s2205 = ssub.s32 2048, 2048
      %2206 = vsyncadd [#allocation14], %s2205
      %s2207 = sshll.u32 [#allocation15], 4
      %s2208 = int_to_ptr.vmem [resolvable:$true] %s2207
      %2213 = dma.vmem_to_hbm [thread:$0]  %s2208, 2048, %s6, [#allocation14], 128, 128, 8
    $region49: #{tpu_custom_call.1} parent=1 // pred_fallthru
      _
    // Predicated region
    $region50: #{tpu_custom_call.1} parent=1 // pred_check
      _
    $region51: #{tpu_custom_call.1} parent=1 // pred_check_branch
      %2215 = sbr.rel (0) target = $region53
    $region52: #{tpu_custom_call.1} parent=1 // pred_region
      %s2217 = ssub.s32 2048, 2048
      %2218 = vsyncadd [#allocation17], %s2217
      %s2219 = sshll.u32 [#allocation16], 4
      %s2220 = int_to_ptr.vmem [resolvable:$true] %s2219
      %2225 = dma.vmem_to_hbm [thread:$0]  %s2220, 2048, %s7, [#allocation17], 128, 128, 8
    $region53: #{tpu_custom_call.1} parent=1 // pred_fallthru
      _
    // Predicated region
    $region54: #{tpu_custom_call.1} parent=1 // pred_check
      _
    $region55: #{tpu_custom_call.1} parent=1 // pred_check_branch
      %2227 = sbr.rel (0) target = $region57
    $region56: #{tpu_custom_call.1} parent=1 // pred_region
      %s2229 = ssub.s32 2048, 2048
      %2230 = vsyncadd [#allocation17], %s2229
      %s2231 = sshll.u32 [#allocation18], 4
      %s2232 = int_to_ptr.vmem [resolvable:$true] %s2231
      %2237 = dma.vmem_to_hbm [thread:$0]  %s2232, 2048, %s8, [#allocation17], 128, 128, 8
    $region57: #{tpu_custom_call.1} parent=1 // pred_fallthru
      _
    // Predicated region
    $region58: #{tpu_custom_call.1} parent=1 // pred_check
      _
    $region59: #{tpu_custom_call.1} parent=1 // pred_check_branch
      %2239 = sbr.rel (0) target = $region61
    $region60: #{tpu_custom_call.1} parent=1 // pred_region
      %2240 = dma.done [#allocation8], 384
    $region61: #{tpu_custom_call.1} parent=1 // pred_fallthru
      _
    // Predicated region
    $region62: #{tpu_custom_call.1} parent=1 // pred_check
      _
    $region63: #{tpu_custom_call.1} parent=1 // pred_check_branch
      %2242 = sbr.rel (0) target = $region65
    $region64: #{tpu_custom_call.1} parent=1 // pred_region
      %2243 = dma.done [#allocation14], 2048
    $region65: #{tpu_custom_call.1} parent=1 // pred_fallthru
      _
    // Predicated region
    $region66: #{tpu_custom_call.1} parent=1 // pred_check
      _
    $region67: #{tpu_custom_call.1} parent=1 // pred_check_branch
      %2245 = sbr.rel (0) target = $region69
    $region68: #{tpu_custom_call.1} parent=1 // pred_region
      %2246 = dma.done [#allocation14], 2048
    $region69: #{tpu_custom_call.1} parent=1 // pred_fallthru
      _
    // Predicated region
    $region70: #{tpu_custom_call.1} parent=1 // pred_check
      _
    $region71: #{tpu_custom_call.1} parent=1 // pred_check_branch
      %2248 = sbr.rel (0) target = $region73
    $region72: #{tpu_custom_call.1} parent=1 // pred_region
      %2249 = dma.done [#allocation17], 2048
    $region73: #{tpu_custom_call.1} parent=1 // pred_fallthru
      _
    // Predicated region
    $region74: #{tpu_custom_call.1} parent=1 // pred_check
      _
    $region75: #{tpu_custom_call.1} parent=1 // pred_check_branch
      %2251 = sbr.rel (0) target = $region77
    $region76: #{tpu_custom_call.1} parent=1 // pred_region
      %2252 = dma.done [#allocation17], 2048
    $region77: #{tpu_custom_call.1} parent=1 // pred_fallthru
      _
    %2253 = vsyncpa [#allocation7], 1
    %2254 = vsyncpa [#allocation10], 1
    %2255 = vsyncpa [#allocation8], 1
    %2256 = vsyncpa [#allocation14], 1
    %2257 = vsyncpa [#allocation17], 1

</llo_original>
